<compile_context>
chip_gen: v6e
topology: v6e:2x2x1
jax: 0.10.0
libtpu: 0.0.40
codegen_flags: <defaults>
</compile_context>

<pallas_src>
import functools

import jax
import jax.numpy as jnp
from jax.experimental import pallas as pl
from jax.experimental.pallas import tpu as pltpu


def _conv_mm_kernel(p_ref, w_ref, b_ref, o_ref, *, apply_relu: bool):
    """Fused (patches @ W) + bias [+ ReLU] for one M-tile.

    p_ref: (TM, K)    patch tile          (K = 9 * C_in)
    w_ref: (K, C_out) resident weights
    b_ref: (1, C_out) resident bias
    o_ref: (TM, C_out) output tile
    """
    acc = jnp.dot(p_ref[...], w_ref[...], preferred_element_type=jnp.float32)
    acc = acc + b_ref[...]
    if apply_relu:
        acc = jnp.maximum(acc, 0.0)
    o_ref[...] = acc.astype(o_ref.dtype)


def conv2d_3x3(x_nhwc: jax.Array, w_oihw: jax.Array, bias: jax.Array,
               *, apply_relu: bool, tm: int = 256) -> jax.Array:
    """Valid 3x3 conv (stride 1) + bias (+ ReLU), NHWC in / NHWC out."""
    N, H, W, C_in = x_nhwc.shape
    C_out = w_oihw.shape[0]
    Ho, Wo = H - 2, W - 2
    K = 9 * C_in
    M = N * Ho * Wo

    # --- layout plumbing in plain JAX (im2col + weight repack) -------------
    # patches[n, i, j, (kh, kw, c)] = x[n, i+kh, j+kw, c]
    patches = jnp.concatenate(
        [x_nhwc[:, kh:kh + Ho, kw:kw + Wo, :]
         for kh in range(3) for kw in range(3)],
        axis=-1,
    ).reshape(M, K).astype(jnp.float32)
    # (C_out, C_in, 3, 3) -> (kh, kw, C_in, C_out) -> (9*C_in, C_out)
    w2 = jnp.transpose(w_oihw, (2, 3, 1, 0)).reshape(K, C_out).astype(jnp.float32)
    b2 = bias.reshape(1, C_out).astype(jnp.float32)

    # Pad rows up to a multiple of the M tile (extra rows sliced off after).
    m_pad = pl.cdiv(M, tm) * tm
    if m_pad != M:
        patches = jnp.pad(patches, ((0, m_pad - M), (0, 0)))

    out = pl.pallas_call(
        functools.partial(_conv_mm_kernel, apply_relu=apply_relu),
        out_shape=jax.ShapeDtypeStruct((m_pad, C_out), jnp.float32),
        grid_spec=pltpu.PrefetchScalarGridSpec(
            num_scalar_prefetch=0,
            grid=(m_pad // tm,),
            in_specs=[
                pl.BlockSpec((tm, K), lambda i: (i, 0)),        # patch tile
                pl.BlockSpec((K, C_out), lambda i: (0, 0)),     # resident W
                pl.BlockSpec((1, C_out), lambda i: (0, 0)),     # resident bias
            ],
            out_specs=pl.BlockSpec((tm, C_out), lambda i: (i, 0)),
        ),
        compiler_params=pltpu.CompilerParams(
            dimension_semantics=("parallel",),   # megacore-shardable on v7x
        ),
    )(patches, w2, b2)

    return out[:M].reshape(N, Ho, Wo, C_out)


def cnn_forward(x_nchw, hidden_params, output_params):
    """CNN.forward: hidden [conv3x3 + ReLU]* then output conv3x3.

    x_nchw: (N, C_in, H, W) float32; params are (OIHW weight, bias) tuples.
    Returns (N, C_out, H - 2*(L+1), W - 2*(L+1)) in NCHW, matching PyTorch.
    """
    x = jnp.transpose(x_nchw, (0, 2, 3, 1))  # NCHW -> NHWC once
    for w, b in hidden_params:
        x = conv2d_3x3(x, w, b, apply_relu=True)
    w_out, b_out = output_params
    x = conv2d_3x3(x, w_out, b_out, apply_relu=False)
    return jnp.transpose(x, (0, 3, 1, 2))    # NHWC -> NCHW


# ---------------------------- reference (plain JAX) -------------------------
def _ref_conv(x, w, b):
    out = jax.lax.conv_general_dilated(
        x, w, window_strides=(1, 1), padding="VALID",
        dimension_numbers=("NCHW", "OIHW", "NCHW"))
    return out + b.reshape(1, -1, 1, 1)


def _ref_forward(x, hidden_params, output_params):
    for w, b in hidden_params:
        x = jnp.maximum(_ref_conv(x, w, b), 0.0)
    w_out, b_out = output_params
    return _ref_conv(x, w_out, b_out)


if __name__ == "__main__":
    # Module config: CNN(n_input_channels=4, n_hidden_layers=2,
    #                    n_hidden_kernels=8, n_output_channels=4)
    n_input_channels = 4
    n_hidden_layers = 2
    n_hidden_kernels = 8
    n_output_channels = 4
    batch, height, width = 2, 16, 16

    key = jax.random.PRNGKey(0)
    keys = jax.random.split(key, 2 * (n_hidden_layers + 1) + 1)

    hidden_params = []
    c_in = n_input_channels
    ki = 0
    for _ in range(n_hidden_layers):
        w = 0.1 * jax.random.normal(
            keys[ki], (n_hidden_kernels, c_in, 3, 3), dtype=jnp.float32)
        b = 0.1 * jax.random.normal(
            keys[ki + 1], (n_hidden_kernels,), dtype=jnp.float32)
        hidden_params.append((w, b))
        c_in = n_hidden_kernels
        ki += 2
    w_out = 0.1 * jax.random.normal(
        keys[ki], (n_output_channels, c_in, 3, 3), dtype=jnp.float32)
    b_out = 0.1 * jax.random.normal(
        keys[ki + 1], (n_output_channels,), dtype=jnp.float32)
    output_params = (w_out, b_out)

    x = jax.random.normal(
        keys[ki + 2], (batch, n_input_channels, height, width),
        dtype=jnp.float32)

    fwd = jax.jit(cnn_forward)
    out = jax.block_until_ready(fwd(x, hidden_params, output_params))

    ref = _ref_forward(x, hidden_params, output_params)

    expect_hw = height - 2 * (n_hidden_layers + 1)
    assert out.shape == (batch, n_output_channels, expect_hw, expect_hw), out.shape
    assert jnp.allclose(out, ref, atol=1e-4, rtol=1e-4), (
        float(jnp.max(jnp.abs(out - ref))))

    print("KERNEL_OK")
</pallas_src>

<mosaic_0001>
module attributes {stable_mosaic.version = 11 : i64} {
  func.func @_conv_mm_kernel(%arg0: i32, %arg1: memref<256x36xf32, #tpu.memory_space<vmem>>, %arg2: memref<36x8xf32, #tpu.memory_space<vmem>>, %arg3: memref<1x8xf32, #tpu.memory_space<vmem>>, %arg4: memref<256x8xf32, #tpu.memory_space<vmem>>) attributes {dimension_semantics = [#tpu.dimension_semantics<parallel>], iteration_bounds = array<i64: 2>, scalar_prefetch = 0 : i64, scratch_operands = 0 : i64, tpu.core_type = #tpu.core_type<tc>, window_params = [{transform_indices = @transform_0, window_bounds = array<i64: 256, 36>}, {pipeline_mode = #tpu.pipeline_mode<synchronous>, transform_indices = @transform_1, window_bounds = array<i64: 36, 8>}, {pipeline_mode = #tpu.pipeline_mode<synchronous>, transform_indices = @transform_2, window_bounds = array<i64: 1, 8>}, {transform_indices = @transform_3, window_bounds = array<i64: 256, 8>}]} {
    %c0 = arith.constant 0 : index
    %c0_0 = arith.constant 0 : index
    %0 = vector.load %arg1[%c0, %c0_0] : memref<256x36xf32, #tpu.memory_space<vmem>>, vector<256x36xf32>
    %c0_1 = arith.constant 0 : index
    %c0_2 = arith.constant 0 : index
    %1 = vector.load %arg2[%c0_1, %c0_2] : memref<36x8xf32, #tpu.memory_space<vmem>>, vector<36x8xf32>
    %cst = arith.constant dense<0.000000e+00> : vector<256x8xf32>
    %2 = tpu.matmul %0, %1, %cst {dimension_numbers = #tpu.dot_dimension_numbers<[1], [0], [0], [1], [0, 0, 1, 1], [], []>} : vector<256x36xf32>, vector<36x8xf32>, vector<256x8xf32> -> vector<256x8xf32>
    %c0_3 = arith.constant 0 : index
    %c0_4 = arith.constant 0 : index
    %3 = vector.load %arg3[%c0_3, %c0_4] : memref<1x8xf32, #tpu.memory_space<vmem>>, vector<1x8xf32>
    %4 = vector.broadcast %3 : vector<1x8xf32> to vector<256x8xf32>
    %5 = arith.addf %2, %4 : vector<256x8xf32>
    %cst_5 = arith.constant 0.000000e+00 : f32
    %6 = vector.broadcast %cst_5 : f32 to vector<256x8xf32>
    %7 = arith.maximumf %5, %6 : vector<256x8xf32>
    %c0_6 = arith.constant 0 : index
    %c0_7 = arith.constant 0 : index
    %8 = vector.load %arg4[%c0_6, %c0_7] : memref<256x8xf32, #tpu.memory_space<vmem>>, vector<256x8xf32>
    tpu.vector_store %arg4[%c0_6, %c0_7], %7 {strides = array<i32>} : memref<256x8xf32, #tpu.memory_space<vmem>>, vector<256x8xf32>,
    return
  }
  func.func @transform_0(%arg0: i32) -> (i32, i32) {
    %c0_i32 = arith.constant 0 : i32
    %c0_i32_0 = arith.constant 0 : i32
    return %arg0, %c0_i32 : i32, i32
  }
  func.func @transform_1(%arg0: i32) -> (i32, i32) {
    %c0_i32 = arith.constant 0 : i32
    %c0_i32_0 = arith.constant 0 : i32
    %c0_i32_1 = arith.constant 0 : i32
    return %c0_i32, %c0_i32_0 : i32, i32
  }
  func.func @transform_2(%arg0: i32) -> (i32, i32) {
    %c0_i32 = arith.constant 0 : i32
    %c0_i32_0 = arith.constant 0 : i32
    %c0_i32_1 = arith.constant 0 : i32
    return %c0_i32, %c0_i32_0 : i32, i32
  }
  func.func @transform_3(%arg0: i32) -> (i32, i32) {
    %c0_i32 = arith.constant 0 : i32
    %c0_i32_0 = arith.constant 0 : i32
    return %arg0, %c0_i32 : i32, i32
  }
}

module attributes {stable_mosaic.version = 11 : i64} {
  func.func @_conv_mm_kernel(%arg0: i32, %arg1: memref<256x72xf32, #tpu.memory_space<vmem>>, %arg2: memref<72x8xf32, #tpu.memory_space<vmem>>, %arg3: memref<1x8xf32, #tpu.memory_space<vmem>>, %arg4: memref<256x8xf32, #tpu.memory_space<vmem>>) attributes {dimension_semantics = [#tpu.dimension_semantics<parallel>], iteration_bounds = array<i64: 2>, scalar_prefetch = 0 : i64, scratch_operands = 0 : i64, tpu.core_type = #tpu.core_type<tc>, window_params = [{transform_indices = @transform_0, window_bounds = array<i64: 256, 72>}, {pipeline_mode = #tpu.pipeline_mode<synchronous>, transform_indices = @transform_1, window_bounds = array<i64: 72, 8>}, {pipeline_mode = #tpu.pipeline_mode<synchronous>, transform_indices = @transform_2, window_bounds = array<i64: 1, 8>}, {transform_indices = @transform_3, window_bounds = array<i64: 256, 8>}]} {
    %c0 = arith.constant 0 : index
    %c0_0 = arith.constant 0 : index
    %0 = vector.load %arg1[%c0, %c0_0] : memref<256x72xf32, #tpu.memory_space<vmem>>, vector<256x72xf32>
    %c0_1 = arith.constant 0 : index
    %c0_2 = arith.constant 0 : index
    %1 = vector.load %arg2[%c0_1, %c0_2] : memref<72x8xf32, #tpu.memory_space<vmem>>, vector<72x8xf32>
    %cst = arith.constant dense<0.000000e+00> : vector<256x8xf32>
    %2 = tpu.matmul %0, %1, %cst {dimension_numbers = #tpu.dot_dimension_numbers<[1], [0], [0], [1], [0, 0, 1, 1], [], []>} : vector<256x72xf32>, vector<72x8xf32>, vector<256x8xf32> -> vector<256x8xf32>
    %c0_3 = arith.constant 0 : index
    %c0_4 = arith.constant 0 : index
    %3 = vector.load %arg3[%c0_3, %c0_4] : memref<1x8xf32, #tpu.memory_space<vmem>>, vector<1x8xf32>
    %4 = vector.broadcast %3 : vector<1x8xf32> to vector<256x8xf32>
    %5 = arith.addf %2, %4 : vector<256x8xf32>
    %cst_5 = arith.constant 0.000000e+00 : f32
    %6 = vector.broadcast %cst_5 : f32 to vector<256x8xf32>
    %7 = arith.maximumf %5, %6 : vector<256x8xf32>
    %c0_6 = arith.constant 0 : index
    %c0_7 = arith.constant 0 : index
    %8 = vector.load %arg4[%c0_6, %c0_7] : memref<256x8xf32, #tpu.memory_space<vmem>>, vector<256x8xf32>
    tpu.vector_store %arg4[%c0_6, %c0_7], %7 {strides = array<i32>} : memref<256x8xf32, #tpu.memory_space<vmem>>, vector<256x8xf32>,
    return
  }
  func.func @transform_0(%arg0: i32) -> (i32, i32) {
    %c0_i32 = arith.constant 0 : i32
    %c0_i32_0 = arith.constant 0 : i32
    return %arg0, %c0_i32 : i32, i32
  }
  func.func @transform_1(%arg0: i32) -> (i32, i32) {
    %c0_i32 = arith.constant 0 : i32
    %c0_i32_0 = arith.constant 0 : i32
    %c0_i32_1 = arith.constant 0 : i32
    return %c0_i32, %c0_i32_0 : i32, i32
  }
  func.func @transform_2(%arg0: i32) -> (i32, i32) {
    %c0_i32 = arith.constant 0 : i32
    %c0_i32_0 = arith.constant 0 : i32
    %c0_i32_1 = arith.constant 0 : i32
    return %c0_i32, %c0_i32_0 : i32, i32
  }
  func.func @transform_3(%arg0: i32) -> (i32, i32) {
    %c0_i32 = arith.constant 0 : i32
    %c0_i32_0 = arith.constant 0 : i32
    return %arg0, %c0_i32 : i32, i32
  }
}

module attributes {stable_mosaic.version = 11 : i64} {
  func.func @_conv_mm_kernel(%arg0: i32, %arg1: memref<256x72xf32, #tpu.memory_space<vmem>>, %arg2: memref<72x4xf32, #tpu.memory_space<vmem>>, %arg3: memref<1x4xf32, #tpu.memory_space<vmem>>, %arg4: memref<256x4xf32, #tpu.memory_space<vmem>>) attributes {dimension_semantics = [#tpu.dimension_semantics<parallel>], iteration_bounds = array<i64: 1>, scalar_prefetch = 0 : i64, scratch_operands = 0 : i64, tpu.core_type = #tpu.core_type<tc>, window_params = [{transform_indices = @transform_0, window_bounds = array<i64: 256, 72>}, {pipeline_mode = #tpu.pipeline_mode<synchronous>, transform_indices = @transform_1, window_bounds = array<i64: 72, 4>}, {pipeline_mode = #tpu.pipeline_mode<synchronous>, transform_indices = @transform_2, window_bounds = array<i64: 1, 4>}, {transform_indices = @transform_3, window_bounds = array<i64: 256, 4>}]} {
    %c0 = arith.constant 0 : index
    %c0_0 = arith.constant 0 : index
    %0 = vector.load %arg1[%c0, %c0_0] : memref<256x72xf32, #tpu.memory_space<vmem>>, vector<256x72xf32>
    %c0_1 = arith.constant 0 : index
    %c0_2 = arith.constant 0 : index
    %1 = vector.load %arg2[%c0_1, %c0_2] : memref<72x4xf32, #tpu.memory_space<vmem>>, vector<72x4xf32>
    %cst = arith.constant dense<0.000000e+00> : vector<256x4xf32>
    %2 = tpu.matmul %0, %1, %cst {dimension_numbers = #tpu.dot_dimension_numbers<[1], [0], [0], [1], [0, 0, 1, 1], [], []>} : vector<256x72xf32>, vector<72x4xf32>, vector<256x4xf32> -> vector<256x4xf32>
    %c0_3 = arith.constant 0 : index
    %c0_4 = arith.constant 0 : index
    %3 = vector.load %arg3[%c0_3, %c0_4] : memref<1x4xf32, #tpu.memory_space<vmem>>, vector<1x4xf32>
    %4 = vector.broadcast %3 : vector<1x4xf32> to vector<256x4xf32>
    %5 = arith.addf %2, %4 : vector<256x4xf32>
    %c0_5 = arith.constant 0 : index
    %c0_6 = arith.constant 0 : index
    %6 = vector.load %arg4[%c0_5, %c0_6] : memref<256x4xf32, #tpu.memory_space<vmem>>, vector<256x4xf32>
    tpu.vector_store %arg4[%c0_5, %c0_6], %5 {strides = array<i32>} : memref<256x4xf32, #tpu.memory_space<vmem>>, vector<256x4xf32>,
    return
  }
  func.func @transform_0(%arg0: i32) -> (i32, i32) {
    %c0_i32 = arith.constant 0 : i32
    %c0_i32_0 = arith.constant 0 : i32
    return %arg0, %c0_i32 : i32, i32
  }
  func.func @transform_1(%arg0: i32) -> (i32, i32) {
    %c0_i32 = arith.constant 0 : i32
    %c0_i32_0 = arith.constant 0 : i32
    %c0_i32_1 = arith.constant 0 : i32
    return %c0_i32, %c0_i32_0 : i32, i32
  }
  func.func @transform_2(%arg0: i32) -> (i32, i32) {
    %c0_i32 = arith.constant 0 : i32
    %c0_i32_0 = arith.constant 0 : i32
    %c0_i32_1 = arith.constant 0 : i32
    return %c0_i32, %c0_i32_0 : i32, i32
  }
  func.func @transform_3(%arg0: i32) -> (i32, i32) {
    %c0_i32 = arith.constant 0 : i32
    %c0_i32_0 = arith.constant 0 : i32
    return %arg0, %c0_i32 : i32, i32
  }
}

</mosaic_0001>

<llo_original>
// kernel: cnn_forward.3
$region0: #{cnn_forward.3}
  #allocation0 [shape = 'u32[]', space=smem, size = 0x4, offset = 0x4, fixed_abs, tag = 'smem constant byte address 0x4 - core index']
  #allocation1 [shape = 'u32[144,128]{1,0:T(1,128)}', space=vmem, size = 0x12000, scoped, tag = 'internal scratch']
  %s0 = inlined_call_operand.vmem [shape: f32[512,36], index: 0, kind: input, shape index: {}]
  %s1 = inlined_call_operand.vmem [shape: f32[36,8], index: 1, kind: input, shape index: {}]
  %s2 = inlined_call_operand.vmem [shape: f32[1,8], index: 2, kind: input, shape index: {}]
  %s3 = inlined_call_operand.vmem [shape: f32[512,8], index: 3, kind: output, shape index: {}]
  %s4 = sld [smem:[#allocation0]]
  $region45: #{cnn_forward.3} parent=0
    _
  %s6 = ssub.s32 1, %s4
  %s7 = scalar_select 0, %s6, %s4
  loop: start=0, step=1, limit=4
  $region2: #{cnn_forward.3} parent=0 // loop_pre_header
    _
  $region3: #{cnn_forward.3} parent=0 // loop_header
    %s9 = sphi 0, %s13
    %p10 = scmp.ge.s32.totalorder %s9, 4
    %s19 = sphi 0, %s21
    %s22 = sphi 0, %s19
    %s23 = sphi 0, %s22
    %s39 = sphi 0, %s23
    %s43 = sphi 0, %s43
    %s45 = sphi 0, %s43
    %s46 = sphi 0, %s45
    %s60 = sphi 0, %s46
    %s64 = sphi 0, %s64
    %s66 = sphi 0, %s64
    %s67 = sphi 0, %s66
    %s81 = sphi 0, %s67
    %s87 = sphi 0, %s89
    %s90 = sphi 0, %s87
    %s91 = sphi 0, %s90
    %s107 = sphi 0, %s91
  $region4: #{cnn_forward.3} parent=0 // loop_header_branch
    %12 = sbr.rel (%p10) target = $region8
  $region5: #{cnn_forward.3} parent=0 // loop_body
    %s14 = ssub.s32 %s9, 1
    %s15 = ssub.s32 %s9, 2
    %s16 = sadd.s32 %s9, 1
    %s17 = ssub.s32 %s9, %s16
    %p18 = scmp.eq.s32.totalorder %s17, 0
    %s20 = sadd.s32 %s19, 1
    %s21 = scalar_select %p18, %s19, %s20
    %p24 = pneg %p18
    %p25 = scmp.eq.s32.totalorder %s9, 1
    %p26 = por %p24, %p25
    %p27 = scmp.ne.s32.totalorder %s19, %s22
    %p28 = scmp.eq.s32.totalorder %s9, 0
    %p29 = por %p27, %p28
    %p30 = scmp.ne.s32.totalorder %s19, %s22
    %p31 = scmp.eq.s32.totalorder %s14, 1
    %p32 = por %p30, %p31
    %p33 = scmp.ne.s32.totalorder %s22, %s23
    %p34 = scmp.eq.s32.totalorder %s14, 0
    %p35 = por %p33, %p34
    %p36 = scmp.ne.s32.totalorder %s22, %s23
    %p37 = scmp.eq.s32.totalorder %s15, 1
    %p38 = por %p36, %p37
    %p40 = scmp.ne.s32.totalorder %s23, %s39
    %p41 = scmp.eq.s32.totalorder %s15, 0
    %p42 = por %p40, %p41
    %s44 = sadd.s32 %s43, 1
    %p47 = scmp.eq.s32.totalorder %s9, 1
    %p48 = scmp.ne.s32.totalorder %s43, %s45
    %p49 = scmp.eq.s32.totalorder %s9, 0
    %p50 = por %p48, %p49
    %p51 = scmp.ne.s32.totalorder %s43, %s45
    %p52 = scmp.eq.s32.totalorder %s14, 1
    %p53 = por %p51, %p52
    %p54 = scmp.ne.s32.totalorder %s45, %s46
    %p55 = scmp.eq.s32.totalorder %s14, 0
    %p56 = por %p54, %p55
    %p57 = scmp.ne.s32.totalorder %s45, %s46
    %p58 = scmp.eq.s32.totalorder %s15, 1
    %p59 = por %p57, %p58
    %p61 = scmp.ne.s32.totalorder %s46, %s60
    %p62 = scmp.eq.s32.totalorder %s15, 0
    %p63 = por %p61, %p62
    %s65 = sadd.s32 %s64, 1
    %p68 = scmp.eq.s32.totalorder %s9, 1
    %p69 = scmp.ne.s32.totalorder %s64, %s66
    %p70 = scmp.eq.s32.totalorder %s9, 0
    %p71 = por %p69, %p70
    %p72 = scmp.ne.s32.totalorder %s64, %s66
    %p73 = scmp.eq.s32.totalorder %s14, 1
    %p74 = por %p72, %p73
    %p75 = scmp.ne.s32.totalorder %s66, %s67
    %p76 = scmp.eq.s32.totalorder %s14, 0
    %p77 = por %p75, %p76
    %p78 = scmp.ne.s32.totalorder %s66, %s67
    %p79 = scmp.eq.s32.totalorder %s15, 1
    %p80 = por %p78, %p79
    %p82 = scmp.ne.s32.totalorder %s67, %s81
    %p83 = scmp.eq.s32.totalorder %s15, 0
    %p84 = por %p82, %p83
    %s85 = ssub.s32 %s9, %s16
    %p86 = scmp.eq.s32.totalorder %s85, 0
    %s88 = sadd.s32 %s87, 1
    %s89 = scalar_select %p86, %s87, %s88
    %p92 = pneg %p86
    %p93 = scmp.eq.s32.totalorder %s9, 1
    %p94 = por %p92, %p93
    %p95 = scmp.ne.s32.totalorder %s87, %s90
    %p96 = scmp.eq.s32.totalorder %s9, 0
    %p97 = por %p95, %p96
    %p98 = scmp.ne.s32.totalorder %s87, %s90
    %p99 = scmp.eq.s32.totalorder %s14, 1
    %p100 = por %p98, %p99
    %p101 = scmp.ne.s32.totalorder %s90, %s91
    %p102 = scmp.eq.s32.totalorder %s14, 0
    %p103 = por %p101, %p102
    %p104 = scmp.ne.s32.totalorder %s90, %s91
    %p105 = scmp.eq.s32.totalorder %s15, 1
    %p106 = por %p104, %p105
    %p108 = scmp.ne.s32.totalorder %s91, %s107
    %p109 = scmp.eq.s32.totalorder %s15, 0
    %p110 = por %p108, %p109
    %p111 = scmp.le.s32.totalorder 1, %s9
    %p112 = scmp.lt.s32.totalorder %s9, 3
    %p113 = pnand %p111, %p112
    %p114 = pneg %p113
    // Predicated region
    $region9: #{cnn_forward.3} parent=5 // pred_check
      _
    $region10: #{cnn_forward.3} parent=5 // pred_check_branch
      %116 = sbr.rel (%p113) target = $region12
    $region11: #{cnn_forward.3} parent=5 // pred_region
      %s117 = ssub.s32 %s9, 1
      // Predicated region
      $region13: #{cnn_forward.3} parent=11 // pred_check
        %p118 = pneg %p56
      $region14: #{cnn_forward.3} parent=11 // pred_check_branch
        %120 = sbr.rel (%p118) target = $region16
      $region15: #{cnn_forward.3} parent=11 // pred_region
        _
      $region16: #{cnn_forward.3} parent=11 // pred_fallthru
        _
      // Predicated region
      $region17: #{cnn_forward.3} parent=11 // pred_check
        %p121 = pneg %p77
      $region18: #{cnn_forward.3} parent=11 // pred_check_branch
        %123 = sbr.rel (%p121) target = $region20
      $region19: #{cnn_forward.3} parent=11 // pred_region
        _
      $region20: #{cnn_forward.3} parent=11 // pred_fallthru
        _
    $region12: #{cnn_forward.3} parent=5 // pred_fallthru
      _
    %p124 = scmp.lt.s32.totalorder %s9, 2
    // Predicated region
    $region21: #{cnn_forward.3} parent=5 // pred_check
      %p125 = pneg %p124
    $region22: #{cnn_forward.3} parent=5 // pred_check_branch
      %127 = sbr.rel (%p125) target = $region24
    $region23: #{cnn_forward.3} parent=5 // pred_region
      // Predicated region
      $region25: #{cnn_forward.3} parent=23 // pred_check
        %p128 = pneg %p29
      $region26: #{cnn_forward.3} parent=23 // pred_check_branch
        %130 = sbr.rel (%p128) target = $region28
      $region27: #{cnn_forward.3} parent=23 // pred_region
        %s131 = smul.u32 32, %s9
        %p132 = scmp.lt.s32.totalorder %s131, 63
        %s133 = scalar_select %p132, %s131, 63
        %s134 = smul.addr %s133, 8
        %s135 = scalar_lea.vmem %s0, %s134
        %s136 = smul.u32 32, %s9
      $region28: #{cnn_forward.3} parent=23 // pred_fallthru
        _
    $region24: #{cnn_forward.3} parent=5 // pred_fallthru
      _
    %p137 = scmp.le.s32.totalorder 1, %s9
    %p138 = scmp.lt.s32.totalorder %s9, 3
    %p139 = pnand %p137, %p138
    %p140 = pneg %p139
    // Predicated region
    $region29: #{cnn_forward.3} parent=5 // pred_check
      _
    $region30: #{cnn_forward.3} parent=5 // pred_check_branch
      %142 = sbr.rel (%p139) target = $region32
    $region31: #{cnn_forward.3} parent=5 // pred_region
      %s143 = ssub.s32 %s9, 1
      %s144 = smul.u32 32, %s14
      %p145 = scmp.lt.s32.totalorder %s144, 63
      %s146 = scalar_select %p145, %s144, 63
      %s147 = smul.addr %s146, 8
      %s148 = scalar_lea.vmem %s0, %s147
      %p149 = pneg %p35
      %p150 = pneg %p32
      %p151 = pneg %p56
      %p152 = pneg %p53
      %p153 = pneg %p77
      %p154 = pneg %p74
      %p155 = pneg %p103
      %p156 = pneg %p100
      %s157 = smul.u32 32, %s14
      %p158 = scmp.lt.s32.totalorder %s157, 63
      %s159 = scalar_select %p158, %s157, 63
      %s160 = smul.addr %s159, 8
      %s161 = scalar_lea.vmem %s3, %s160
      %s162 = smul.u32 32, %s14
      %p163 = scmp.lt.s32.totalorder %s162, 63
      %s164 = scalar_select %p163, %s162, 63
      %s165 = smul.addr %s164, 8
      %s166 = scalar_lea.vmem %s0, %s165
      %s167 = smul.u32 32, %s14
      %s168 = smul.u32 32, %s14
      %p169 = scmp.lt.s32.totalorder %s168, 63
      %s170 = scalar_select %p169, %s168, 63
      %s171 = smul.addr %s170, 8
      %s172 = scalar_lea.vmem %s3, %s171
      %s173 = smul.u32 32, %s14
      %v174 = vld [vmem:[%s166] sm:$0xff]
      %v175 = vld [vmem:[%s166 + $0x8] sm:$0xff]
      %v176 = vld [vmem:[%s166 + $0x10] sm:$0xff]
      %v177 = vld [vmem:[%s166 + $0x18] sm:$0xff]
      %v178 = vld [vmem:[%s166 + $0x20] sm:$0xff]
      %v179 = vld [vmem:[%s166 + $0x28] sm:$0xff]
      %v180 = vld [vmem:[%s166 + $0x30] sm:$0xff]
      %v181 = vld [vmem:[%s166 + $0x38] sm:$0xff]
      %v182 = vld [vmem:[%s166 + $0x40] sm:$0xff]
      %v183 = vld [vmem:[%s166 + $0x48] sm:$0xff]
      %v184 = vld [vmem:[%s166 + $0x50] sm:$0xff]
      %v185 = vld [vmem:[%s166 + $0x58] sm:$0xff]
      %v186 = vld [vmem:[%s166 + $0x60] sm:$0xff]
      %v187 = vld [vmem:[%s166 + $0x68] sm:$0xff]
      %v188 = vld [vmem:[%s166 + $0x70] sm:$0xff]
      %v189 = vld [vmem:[%s166 + $0x78] sm:$0xff]
      %v190 = vld [vmem:[%s166 + $0x80] sm:$0xff]
      %v191 = vld [vmem:[%s166 + $0x88] sm:$0xff]
      %v192 = vld [vmem:[%s166 + $0x90] sm:$0xff]
      %v193 = vld [vmem:[%s166 + $0x98] sm:$0xff]
      %v194 = vld [vmem:[%s166 + $0xa0] sm:$0xff]
      %v195 = vld [vmem:[%s166 + $0xa8] sm:$0xff]
      %v196 = vld [vmem:[%s166 + $0xb0] sm:$0xff]
      %v197 = vld [vmem:[%s166 + $0xb8] sm:$0xff]
      %v198 = vld [vmem:[%s166 + $0xc0] sm:$0xff]
      %v199 = vld [vmem:[%s166 + $0xc8] sm:$0xff]
      %v200 = vld [vmem:[%s166 + $0xd0] sm:$0xff]
      %v201 = vld [vmem:[%s166 + $0xd8] sm:$0xff]
      %v202 = vld [vmem:[%s166 + $0xe0] sm:$0xff]
      %v203 = vld [vmem:[%s166 + $0xe8] sm:$0xff]
      %v204 = vld [vmem:[%s166 + $0xf0] sm:$0xff]
      %v205 = vld [vmem:[%s166 + $0xf8] sm:$0xff]
      %v206 = vld [vmem:[%s1] sm:$0xff]
      %v207 = vld [vmem:[%s1 + $0x8] sm:$0xff]
      %v208 = vld [vmem:[%s1 + $0x10] sm:$0xff]
      %v209 = vld [vmem:[%s1 + $0x18] sm:$0xff]
      %v210 = vld [vmem:[%s1 + $0x20] sm:$0xf]
      %v211 = vld [vmem:[%s2] sm:$0x1]
      %v213 = vlaneseq
      %v214 = vshrl.u32 %v213, 7
      %v215 = vsub.s32 0, %v214
      %v216 = vrot.slane %v211, %v215
      %vm218 = vcmask 293888
      %v220 = vsel %vm218, %v174, 0
      %v223 = vsel %vm218, %v175, 0
      %v226 = vsel %vm218, %v176, 0
      %v229 = vsel %vm218, %v177, 0
      %v232 = vsel %vm218, %v178, 0
      %v235 = vsel %vm218, %v179, 0
      %v238 = vsel %vm218, %v180, 0
      %v241 = vsel %vm218, %v181, 0
      %v244 = vsel %vm218, %v182, 0
      %v247 = vsel %vm218, %v183, 0
      %v250 = vsel %vm218, %v184, 0
      %v253 = vsel %vm218, %v185, 0
      %v256 = vsel %vm218, %v186, 0
      %v259 = vsel %vm218, %v187, 0
      %v262 = vsel %vm218, %v188, 0
      %v265 = vsel %vm218, %v189, 0
      %v268 = vsel %vm218, %v190, 0
      %v271 = vsel %vm218, %v191, 0
      %v274 = vsel %vm218, %v192, 0
      %v277 = vsel %vm218, %v193, 0
      %v280 = vsel %vm218, %v194, 0
      %v283 = vsel %vm218, %v195, 0
      %v286 = vsel %vm218, %v196, 0
      %v289 = vsel %vm218, %v197, 0
      %v292 = vsel %vm218, %v198, 0
      %v295 = vsel %vm218, %v199, 0
      %v298 = vsel %vm218, %v200, 0
      %v301 = vsel %vm218, %v201, 0
      %v304 = vsel %vm218, %v202, 0
      %v307 = vsel %vm218, %v203, 0
      %v310 = vsel %vm218, %v204, 0
      %v313 = vsel %vm218, %v205, 0
      %vm315 = vcmask 1043456
      %v317 = vsel %vm315, %v210, 0
      %319 = vmatprep.subr.mxu0 0.0
      %320 = vmatpush1.msra.mxu0 0.0
      %321 = vmatprep.subr.mxu0 0.0
      %322 = vmatpush1.msra.mxu0 0.0
      %323 = vmatprep.subr.mxu0 0.0
      %324 = vmatpush1.msra.mxu0 0.0
      %325 = vmatprep.subr.mxu0 0.0
      %326 = vmatpush1.msra.mxu0 0.0
      %327 = vmatprep.subr.mxu0 0.0
      %328 = vmatpush1.msra.mxu0 0.0
      %329 = vmatprep.subr.mxu0 0.0
      %330 = vmatpush1.msra.mxu0 0.0
      %331 = vmatprep.subr.mxu0 0.0
      %332 = vmatpush1.msra.mxu0 0.0
      %333 = vmatprep.subr.mxu0 0.0
      %334 = vmatpush1.msra.mxu0 0.0
      %335 = vmatprep.subr.mxu0 0.0
      %336 = vmatpush1.msra.mxu0 0.0
      %337 = vmatprep.subr.mxu0 0.0
      %338 = vmatpush1.msra.mxu0 0.0
      %339 = vmatprep.subr.mxu0 0.0
      %340 = vmatpush1.msra.mxu0 0.0
      %341 = vmatprep.subr.mxu0 0.0
      %342 = vmatpush1.msra.mxu0 %v317
      %343 = vmatprep.subr.mxu0 0.0
      %344 = vmatpush1.msra.mxu0 %v209
      %345 = vmatprep.subr.mxu0 0.0
      %346 = vmatpush1.msra.mxu0 %v208
      %347 = vmatprep.subr.mxu0 0.0
      %348 = vmatpush1.msra.mxu0 %v207
      %349 = vmatprep.subr.mxu0 0.0
      %350 = vmatpush1.msra.mxu0 %v206
      %351 = vmatprep.subr.mxu0 0.0
      %352 = vmatpush2.msra.mxu0 0.0
      %353 = vmatprep.subr.mxu0 0.0
      %354 = vmatpush2.msra.mxu0 0.0
      %355 = vmatprep.subr.mxu0 0.0
      %356 = vmatpush2.msra.mxu0 0.0
      %357 = vmatprep.subr.mxu0 0.0
      %358 = vmatpush2.msra.mxu0 0.0
      %359 = vmatprep.subr.mxu0 0.0
      %360 = vmatpush2.msra.mxu0 0.0
      %361 = vmatprep.subr.mxu0 0.0
      %362 = vmatpush2.msra.mxu0 0.0
      %363 = vmatprep.subr.mxu0 0.0
      %364 = vmatpush2.msra.mxu0 0.0
      %365 = vmatprep.subr.mxu0 0.0
      %366 = vmatpush2.msra.mxu0 0.0
      %367 = vmatprep.subr.mxu0 0.0
      %368 = vmatpush2.msra.mxu0 0.0
      %369 = vmatprep.subr.mxu0 0.0
      %370 = vmatpush2.msra.mxu0 0.0
      %371 = vmatprep.subr.mxu0 0.0
      %372 = vmatpush2.msra.mxu0 0.0
      %373 = vmatprep.subr.mxu0 0.0
      %374 = vmatpush2.msra.mxu0 0.0
      %375 = vmatprep.subr.mxu0 0.0
      %376 = vmatpush2.msra.mxu0 0.0
      %377 = vmatprep.subr.mxu0 0.0
      %378 = vmatpush2.msra.mxu0 0.0
      %379 = vmatprep.subr.mxu0 0.0
      %380 = vmatpush2.msra.mxu0 0.0
      %381 = vmatprep.subr.mxu0 0.0
      %382 = vmatpush2.msra.mxu0 0.0
      %383 = vmatprep.mubr.f32.mxu0 0.0
      %384 = vmatmul.mubr.f32.gmra.mxu0 %v220
      %v385 = vpop.f32.mrf.mxu0
      %v386 = vadd.f32 %v216, %v385
      %v387 = vpop.f32.mrf.mxu0
      %388 = vmatprep.mubr.f32.mxu0 0.0
      %389 = vmatmul.mubr.f32.gmra.mxu0 %v223
      %v390 = vpop.f32.mrf.mxu0
      %v391 = vadd.f32 %v216, %v390
      %v392 = vpop.f32.mrf.mxu0
      %393 = vmatprep.mubr.f32.mxu0 0.0
      %394 = vmatmul.mubr.f32.gmra.mxu0 %v226
      %v395 = vpop.f32.mrf.mxu0
      %v396 = vadd.f32 %v216, %v395
      %v397 = vpop.f32.mrf.mxu0
      %398 = vmatprep.mubr.f32.mxu0 0.0
      %399 = vmatmul.mubr.f32.gmra.mxu0 %v229
      %v400 = vpop.f32.mrf.mxu0
      %v401 = vadd.f32 %v216, %v400
      %v402 = vpop.f32.mrf.mxu0
      %403 = vmatprep.mubr.f32.mxu0 0.0
      %404 = vmatmul.mubr.f32.gmra.mxu0 %v232
      %v405 = vpop.f32.mrf.mxu0
      %v406 = vadd.f32 %v216, %v405
      %v407 = vpop.f32.mrf.mxu0
      %408 = vmatprep.mubr.f32.mxu0 0.0
      %409 = vmatmul.mubr.f32.gmra.mxu0 %v235
      %v410 = vpop.f32.mrf.mxu0
      %v411 = vadd.f32 %v216, %v410
      %v412 = vpop.f32.mrf.mxu0
      %413 = vmatprep.mubr.f32.mxu0 0.0
      %414 = vmatmul.mubr.f32.gmra.mxu0 %v238
      %v415 = vpop.f32.mrf.mxu0
      %v416 = vadd.f32 %v216, %v415
      %v417 = vpop.f32.mrf.mxu0
      %418 = vmatprep.mubr.f32.mxu0 0.0
      %419 = vmatmul.mubr.f32.gmra.mxu0 %v241
      %v420 = vpop.f32.mrf.mxu0
      %v421 = vadd.f32 %v216, %v420
      %v422 = vpop.f32.mrf.mxu0
      %423 = vmatprep.mubr.f32.mxu0 0.0
      %424 = vmatmul.mubr.f32.gmra.mxu0 %v244
      %v425 = vpop.f32.mrf.mxu0
      %v426 = vadd.f32 %v216, %v425
      %v427 = vpop.f32.mrf.mxu0
      %428 = vmatprep.mubr.f32.mxu0 0.0
      %429 = vmatmul.mubr.f32.gmra.mxu0 %v247
      %v430 = vpop.f32.mrf.mxu0
      %v431 = vadd.f32 %v216, %v430
      %v432 = vpop.f32.mrf.mxu0
      %433 = vmatprep.mubr.f32.mxu0 0.0
      %434 = vmatmul.mubr.f32.gmra.mxu0 %v250
      %v435 = vpop.f32.mrf.mxu0
      %v436 = vadd.f32 %v216, %v435
      %v437 = vpop.f32.mrf.mxu0
      %438 = vmatprep.mubr.f32.mxu0 0.0
      %439 = vmatmul.mubr.f32.gmra.mxu0 %v253
      %v440 = vpop.f32.mrf.mxu0
      %v441 = vadd.f32 %v216, %v440
      %v442 = vpop.f32.mrf.mxu0
      %443 = vmatprep.mubr.f32.mxu0 0.0
      %444 = vmatmul.mubr.f32.gmra.mxu0 %v256
      %v445 = vpop.f32.mrf.mxu0
      %v446 = vadd.f32 %v216, %v445
      %v447 = vpop.f32.mrf.mxu0
      %448 = vmatprep.mubr.f32.mxu0 0.0
      %449 = vmatmul.mubr.f32.gmra.mxu0 %v259
      %v450 = vpop.f32.mrf.mxu0
      %v451 = vadd.f32 %v216, %v450
      %v452 = vpop.f32.mrf.mxu0
      %453 = vmatprep.mubr.f32.mxu0 0.0
      %454 = vmatmul.mubr.f32.gmra.mxu0 %v262
      %v455 = vpop.f32.mrf.mxu0
      %v456 = vadd.f32 %v216, %v455
      %v457 = vpop.f32.mrf.mxu0
      %458 = vmatprep.mubr.f32.mxu0 0.0
      %459 = vmatmul.mubr.f32.gmra.mxu0 %v265
      %v460 = vpop.f32.mrf.mxu0
      %v461 = vadd.f32 %v216, %v460
      %v462 = vpop.f32.mrf.mxu0
      %463 = vmatprep.mubr.f32.mxu0 0.0
      %464 = vmatmul.mubr.f32.gmra.mxu0 %v268
      %v465 = vpop.f32.mrf.mxu0
      %v466 = vadd.f32 %v216, %v465
      %v467 = vpop.f32.mrf.mxu0
      %468 = vmatprep.mubr.f32.mxu0 0.0
      %469 = vmatmul.mubr.f32.gmra.mxu0 %v271
      %v470 = vpop.f32.mrf.mxu0
      %v471 = vadd.f32 %v216, %v470
      %v472 = vpop.f32.mrf.mxu0
      %473 = vmatprep.mubr.f32.mxu0 0.0
      %474 = vmatmul.mubr.f32.gmra.mxu0 %v274
      %v475 = vpop.f32.mrf.mxu0
      %v476 = vadd.f32 %v216, %v475
      %v477 = vpop.f32.mrf.mxu0
      %478 = vmatprep.mubr.f32.mxu0 0.0
      %479 = vmatmul.mubr.f32.gmra.mxu0 %v277
      %v480 = vpop.f32.mrf.mxu0
      %v481 = vadd.f32 %v216, %v480
      %v482 = vpop.f32.mrf.mxu0
      %483 = vmatprep.mubr.f32.mxu0 0.0
      %484 = vmatmul.mubr.f32.gmra.mxu0 %v280
      %v485 = vpop.f32.mrf.mxu0
      %v486 = vadd.f32 %v216, %v485
      %v487 = vpop.f32.mrf.mxu0
      %488 = vmatprep.mubr.f32.mxu0 0.0
      %489 = vmatmul.mubr.f32.gmra.mxu0 %v283
      %v490 = vpop.f32.mrf.mxu0
      %v491 = vadd.f32 %v216, %v490
      %v492 = vpop.f32.mrf.mxu0
      %493 = vmatprep.mubr.f32.mxu0 0.0
      %494 = vmatmul.mubr.f32.gmra.mxu0 %v286
      %v495 = vpop.f32.mrf.mxu0
      %v496 = vadd.f32 %v216, %v495
      %v497 = vpop.f32.mrf.mxu0
      %498 = vmatprep.mubr.f32.mxu0 0.0
      %499 = vmatmul.mubr.f32.gmra.mxu0 %v289
      %v500 = vpop.f32.mrf.mxu0
      %v501 = vadd.f32 %v216, %v500
      %v502 = vpop.f32.mrf.mxu0
      %503 = vmatprep.mubr.f32.mxu0 0.0
      %504 = vmatmul.mubr.f32.gmra.mxu0 %v292
      %v505 = vpop.f32.mrf.mxu0
      %v506 = vadd.f32 %v216, %v505
      %v507 = vpop.f32.mrf.mxu0
      %508 = vmatprep.mubr.f32.mxu0 0.0
      %509 = vmatmul.mubr.f32.gmra.mxu0 %v295
      %v510 = vpop.f32.mrf.mxu0
      %v511 = vadd.f32 %v216, %v510
      %v512 = vpop.f32.mrf.mxu0
      %513 = vmatprep.mubr.f32.mxu0 0.0
      %514 = vmatmul.mubr.f32.gmra.mxu0 %v298
      %v515 = vpop.f32.mrf.mxu0
      %v516 = vadd.f32 %v216, %v515
      %v517 = vpop.f32.mrf.mxu0
      %518 = vmatprep.mubr.f32.mxu0 0.0
      %519 = vmatmul.mubr.f32.gmra.mxu0 %v301
      %v520 = vpop.f32.mrf.mxu0
      %v521 = vadd.f32 %v216, %v520
      %v522 = vpop.f32.mrf.mxu0
      %523 = vmatprep.mubr.f32.mxu0 0.0
      %524 = vmatmul.mubr.f32.gmra.mxu0 %v304
      %v525 = vpop.f32.mrf.mxu0
      %v526 = vadd.f32 %v216, %v525
      %v527 = vpop.f32.mrf.mxu0
      %528 = vmatprep.mubr.f32.mxu0 0.0
      %529 = vmatmul.mubr.f32.gmra.mxu0 %v307
      %v530 = vpop.f32.mrf.mxu0
      %v531 = vadd.f32 %v216, %v530
      %v532 = vpop.f32.mrf.mxu0
      %533 = vmatprep.mubr.f32.mxu0 0.0
      %534 = vmatmul.mubr.f32.gmra.mxu0 %v310
      %v535 = vpop.f32.mrf.mxu0
      %v536 = vadd.f32 %v216, %v535
      %v537 = vpop.f32.mrf.mxu0
      %538 = vmatprep.mubr.f32.mxu0 0.0
      %539 = vmatmul.mubr.f32.gmra.mxu0 %v313
      %v540 = vpop.f32.mrf.mxu0
      %v541 = vadd.f32 %v216, %v540
      %v542 = vpop.f32.mrf.mxu0
      %543 = vdwg.mxu0
      %v544 = vmax.f32 %v386, 0.0
      %v545 = vmax.f32 %v391, 0.0
      %v546 = vmax.f32 %v396, 0.0
      %v547 = vmax.f32 %v401, 0.0
      %v548 = vmax.f32 %v406, 0.0
      %v549 = vmax.f32 %v411, 0.0
      %v550 = vmax.f32 %v416, 0.0
      %v551 = vmax.f32 %v421, 0.0
      %v552 = vmax.f32 %v426, 0.0
      %v553 = vmax.f32 %v431, 0.0
      %v554 = vmax.f32 %v436, 0.0
      %v555 = vmax.f32 %v441, 0.0
      %v556 = vmax.f32 %v446, 0.0
      %v557 = vmax.f32 %v451, 0.0
      %v558 = vmax.f32 %v456, 0.0
      %v559 = vmax.f32 %v461, 0.0
      %v560 = vmax.f32 %v466, 0.0
      %v561 = vmax.f32 %v471, 0.0
      %v562 = vmax.f32 %v476, 0.0
      %v563 = vmax.f32 %v481, 0.0
      %v564 = vmax.f32 %v486, 0.0
      %v565 = vmax.f32 %v491, 0.0
      %v566 = vmax.f32 %v496, 0.0
      %v567 = vmax.f32 %v501, 0.0
      %v568 = vmax.f32 %v506, 0.0
      %v569 = vmax.f32 %v511, 0.0
      %v570 = vmax.f32 %v516, 0.0
      %v571 = vmax.f32 %v521, 0.0
      %v572 = vmax.f32 %v526, 0.0
      %v573 = vmax.f32 %v531, 0.0
      %v574 = vmax.f32 %v536, 0.0
      %v575 = vmax.f32 %v541, 0.0
      %vm576 = vcmask 64512
      %577 = vst.msk [vmem:[%s172] sm:$0xff] %vm576, %v544
      %578 = vst.msk [vmem:[%s172 + $0x8] sm:$0xff] %vm576, %v545
      %579 = vst.msk [vmem:[%s172 + $0x10] sm:$0xff] %vm576, %v546
      %580 = vst.msk [vmem:[%s172 + $0x18] sm:$0xff] %vm576, %v547
      %581 = vst.msk [vmem:[%s172 + $0x20] sm:$0xff] %vm576, %v548
      %582 = vst.msk [vmem:[%s172 + $0x28] sm:$0xff] %vm576, %v549
      %583 = vst.msk [vmem:[%s172 + $0x30] sm:$0xff] %vm576, %v550
      %584 = vst.msk [vmem:[%s172 + $0x38] sm:$0xff] %vm576, %v551
      %585 = vst.msk [vmem:[%s172 + $0x40] sm:$0xff] %vm576, %v552
      %586 = vst.msk [vmem:[%s172 + $0x48] sm:$0xff] %vm576, %v553
      %587 = vst.msk [vmem:[%s172 + $0x50] sm:$0xff] %vm576, %v554
      %588 = vst.msk [vmem:[%s172 + $0x58] sm:$0xff] %vm576, %v555
      %589 = vst.msk [vmem:[%s172 + $0x60] sm:$0xff] %vm576, %v556
      %590 = vst.msk [vmem:[%s172 + $0x68] sm:$0xff] %vm576, %v557
      %591 = vst.msk [vmem:[%s172 + $0x70] sm:$0xff] %vm576, %v558
      %592 = vst.msk [vmem:[%s172 + $0x78] sm:$0xff] %vm576, %v559
      %593 = vst.msk [vmem:[%s172 + $0x80] sm:$0xff] %vm576, %v560
      %594 = vst.msk [vmem:[%s172 + $0x88] sm:$0xff] %vm576, %v561
      %595 = vst.msk [vmem:[%s172 + $0x90] sm:$0xff] %vm576, %v562
      %596 = vst.msk [vmem:[%s172 + $0x98] sm:$0xff] %vm576, %v563
      %597 = vst.msk [vmem:[%s172 + $0xa0] sm:$0xff] %vm576, %v564
      %598 = vst.msk [vmem:[%s172 + $0xa8] sm:$0xff] %vm576, %v565
      %599 = vst.msk [vmem:[%s172 + $0xb0] sm:$0xff] %vm576, %v566
      %600 = vst.msk [vmem:[%s172 + $0xb8] sm:$0xff] %vm576, %v567
      %601 = vst.msk [vmem:[%s172 + $0xc0] sm:$0xff] %vm576, %v568
      %602 = vst.msk [vmem:[%s172 + $0xc8] sm:$0xff] %vm576, %v569
      %603 = vst.msk [vmem:[%s172 + $0xd0] sm:$0xff] %vm576, %v570
      %604 = vst.msk [vmem:[%s172 + $0xd8] sm:$0xff] %vm576, %v571
      %605 = vst.msk [vmem:[%s172 + $0xe0] sm:$0xff] %vm576, %v572
      %606 = vst.msk [vmem:[%s172 + $0xe8] sm:$0xff] %vm576, %v573
      %607 = vst.msk [vmem:[%s172 + $0xf0] sm:$0xff] %vm576, %v574
      %608 = vst.msk [vmem:[%s172 + $0xf8] sm:$0xff] %vm576, %v575
      %s609 = smul.u32 32, %s14
      %p610 = scmp.lt.s32.totalorder %s609, 63
      %s611 = scalar_select %p610, %s609, 63
      %s612 = smul.addr %s611, 8
      %s613 = scalar_lea.vmem %s3, %s612
      // Predicated region
      $region33: #{cnn_forward.3} parent=31 // pred_check
        %p614 = pneg %p100
      $region34: #{cnn_forward.3} parent=31 // pred_check_branch
        %616 = sbr.rel (%p614) target = $region36
      $region35: #{cnn_forward.3} parent=31 // pred_region
        %s617 = smul.u32 32, %s14
      $region36: #{cnn_forward.3} parent=31 // pred_fallthru
        _
    $region32: #{cnn_forward.3} parent=5 // pred_fallthru
      _
    %p618 = scmp.le.s32.totalorder 2, %s9
    // Predicated region
    $region37: #{cnn_forward.3} parent=5 // pred_check
      %p619 = pneg %p618
    $region38: #{cnn_forward.3} parent=5 // pred_check_branch
      %621 = sbr.rel (%p619) target = $region40
    $region39: #{cnn_forward.3} parent=5 // pred_region
      %s622 = ssub.s32 %s9, 2
      // Predicated region
      $region41: #{cnn_forward.3} parent=39 // pred_check
        %p623 = pneg %p106
      $region42: #{cnn_forward.3} parent=39 // pred_check_branch
        %625 = sbr.rel (%p623) target = $region44
      $region43: #{cnn_forward.3} parent=39 // pred_region
        %s626 = smul.u32 32, %s15
        %p627 = scmp.lt.s32.totalorder %s626, 63
        %s628 = scalar_select %p627, %s626, 63
        %s629 = smul.addr %s628, 8
        %s630 = scalar_lea.vmem %s3, %s629
      $region44: #{cnn_forward.3} parent=39 // pred_fallthru
        _
    $region40: #{cnn_forward.3} parent=5 // pred_fallthru
      _
  $region6: #{cnn_forward.3} parent=0 // loop_footer
    %s13 = sadd.s32 1, %s9
  $region7: #{cnn_forward.3} parent=0 // loop_footer_branch
    %8 = sbr.rel target = $region3
  $region8: #{cnn_forward.3} parent=0 // loop_exit
    _

// kernel: cnn_forward.4
$region0: #{cnn_forward.4}
  #allocation0 [shape = 'u32[]', space=smem, size = 0x4, offset = 0x4, fixed_abs, tag = 'smem constant byte address 0x4 - core index']
  #allocation1 [shape = 'u32[144,128]{1,0:T(1,128)}', space=vmem, size = 0x12000, scoped, tag = 'internal scratch']
  %s0 = inlined_call_operand.vmem [shape: f32[512,72], index: 0, kind: input, shape index: {}]
  %s1 = inlined_call_operand.vmem [shape: f32[72,8], index: 1, kind: input, shape index: {}]
  %s2 = inlined_call_operand.vmem [shape: f32[1,8], index: 2, kind: input, shape index: {}]
  %s3 = inlined_call_operand.vmem [shape: f32[512,8], index: 3, kind: output, shape index: {}]
  %s4 = sld [smem:[#allocation0]]
  $region45: #{cnn_forward.4} parent=0
    _
  %s6 = ssub.s32 1, %s4
  %s7 = scalar_select 0, %s6, %s4
  loop: start=0, step=1, limit=4
  $region2: #{cnn_forward.4} parent=0 // loop_pre_header
    _
  $region3: #{cnn_forward.4} parent=0 // loop_header
    %s9 = sphi 0, %s13
    %p10 = scmp.ge.s32.totalorder %s9, 4
    %s19 = sphi 0, %s21
    %s22 = sphi 0, %s19
    %s23 = sphi 0, %s22
    %s39 = sphi 0, %s23
    %s43 = sphi 0, %s43
    %s45 = sphi 0, %s43
    %s46 = sphi 0, %s45
    %s60 = sphi 0, %s46
    %s64 = sphi 0, %s64
    %s66 = sphi 0, %s64
    %s67 = sphi 0, %s66
    %s81 = sphi 0, %s67
    %s87 = sphi 0, %s89
    %s90 = sphi 0, %s87
    %s91 = sphi 0, %s90
    %s107 = sphi 0, %s91
  $region4: #{cnn_forward.4} parent=0 // loop_header_branch
    %12 = sbr.rel (%p10) target = $region8
  $region5: #{cnn_forward.4} parent=0 // loop_body
    %s14 = ssub.s32 %s9, 1
    %s15 = ssub.s32 %s9, 2
    %s16 = sadd.s32 %s9, 1
    %s17 = ssub.s32 %s9, %s16
    %p18 = scmp.eq.s32.totalorder %s17, 0
    %s20 = sadd.s32 %s19, 1
    %s21 = scalar_select %p18, %s19, %s20
    %p24 = pneg %p18
    %p25 = scmp.eq.s32.totalorder %s9, 1
    %p26 = por %p24, %p25
    %p27 = scmp.ne.s32.totalorder %s19, %s22
    %p28 = scmp.eq.s32.totalorder %s9, 0
    %p29 = por %p27, %p28
    %p30 = scmp.ne.s32.totalorder %s19, %s22
    %p31 = scmp.eq.s32.totalorder %s14, 1
    %p32 = por %p30, %p31
    %p33 = scmp.ne.s32.totalorder %s22, %s23
    %p34 = scmp.eq.s32.totalorder %s14, 0
    %p35 = por %p33, %p34
    %p36 = scmp.ne.s32.totalorder %s22, %s23
    %p37 = scmp.eq.s32.totalorder %s15, 1
    %p38 = por %p36, %p37
    %p40 = scmp.ne.s32.totalorder %s23, %s39
    %p41 = scmp.eq.s32.totalorder %s15, 0
    %p42 = por %p40, %p41
    %s44 = sadd.s32 %s43, 1
    %p47 = scmp.eq.s32.totalorder %s9, 1
    %p48 = scmp.ne.s32.totalorder %s43, %s45
    %p49 = scmp.eq.s32.totalorder %s9, 0
    %p50 = por %p48, %p49
    %p51 = scmp.ne.s32.totalorder %s43, %s45
    %p52 = scmp.eq.s32.totalorder %s14, 1
    %p53 = por %p51, %p52
    %p54 = scmp.ne.s32.totalorder %s45, %s46
    %p55 = scmp.eq.s32.totalorder %s14, 0
    %p56 = por %p54, %p55
    %p57 = scmp.ne.s32.totalorder %s45, %s46
    %p58 = scmp.eq.s32.totalorder %s15, 1
    %p59 = por %p57, %p58
    %p61 = scmp.ne.s32.totalorder %s46, %s60
    %p62 = scmp.eq.s32.totalorder %s15, 0
    %p63 = por %p61, %p62
    %s65 = sadd.s32 %s64, 1
    %p68 = scmp.eq.s32.totalorder %s9, 1
    %p69 = scmp.ne.s32.totalorder %s64, %s66
    %p70 = scmp.eq.s32.totalorder %s9, 0
    %p71 = por %p69, %p70
    %p72 = scmp.ne.s32.totalorder %s64, %s66
    %p73 = scmp.eq.s32.totalorder %s14, 1
    %p74 = por %p72, %p73
    %p75 = scmp.ne.s32.totalorder %s66, %s67
    %p76 = scmp.eq.s32.totalorder %s14, 0
    %p77 = por %p75, %p76
    %p78 = scmp.ne.s32.totalorder %s66, %s67
    %p79 = scmp.eq.s32.totalorder %s15, 1
    %p80 = por %p78, %p79
    %p82 = scmp.ne.s32.totalorder %s67, %s81
    %p83 = scmp.eq.s32.totalorder %s15, 0
    %p84 = por %p82, %p83
    %s85 = ssub.s32 %s9, %s16
    %p86 = scmp.eq.s32.totalorder %s85, 0
    %s88 = sadd.s32 %s87, 1
    %s89 = scalar_select %p86, %s87, %s88
    %p92 = pneg %p86
    %p93 = scmp.eq.s32.totalorder %s9, 1
    %p94 = por %p92, %p93
    %p95 = scmp.ne.s32.totalorder %s87, %s90
    %p96 = scmp.eq.s32.totalorder %s9, 0
    %p97 = por %p95, %p96
    %p98 = scmp.ne.s32.totalorder %s87, %s90
    %p99 = scmp.eq.s32.totalorder %s14, 1
    %p100 = por %p98, %p99
    %p101 = scmp.ne.s32.totalorder %s90, %s91
    %p102 = scmp.eq.s32.totalorder %s14, 0
    %p103 = por %p101, %p102
    %p104 = scmp.ne.s32.totalorder %s90, %s91
    %p105 = scmp.eq.s32.totalorder %s15, 1
    %p106 = por %p104, %p105
    %p108 = scmp.ne.s32.totalorder %s91, %s107
    %p109 = scmp.eq.s32.totalorder %s15, 0
    %p110 = por %p108, %p109
    %p111 = scmp.le.s32.totalorder 1, %s9
    %p112 = scmp.lt.s32.totalorder %s9, 3
    %p113 = pnand %p111, %p112
    %p114 = pneg %p113
    // Predicated region
    $region9: #{cnn_forward.4} parent=5 // pred_check
      _
    $region10: #{cnn_forward.4} parent=5 // pred_check_branch
      %116 = sbr.rel (%p113) target = $region12
    $region11: #{cnn_forward.4} parent=5 // pred_region
      %s117 = ssub.s32 %s9, 1
      // Predicated region
      $region13: #{cnn_forward.4} parent=11 // pred_check
        %p118 = pneg %p56
      $region14: #{cnn_forward.4} parent=11 // pred_check_branch
        %120 = sbr.rel (%p118) target = $region16
      $region15: #{cnn_forward.4} parent=11 // pred_region
        _
      $region16: #{cnn_forward.4} parent=11 // pred_fallthru
        _
      // Predicated region
      $region17: #{cnn_forward.4} parent=11 // pred_check
        %p121 = pneg %p77
      $region18: #{cnn_forward.4} parent=11 // pred_check_branch
        %123 = sbr.rel (%p121) target = $region20
      $region19: #{cnn_forward.4} parent=11 // pred_region
        _
      $region20: #{cnn_forward.4} parent=11 // pred_fallthru
        _
    $region12: #{cnn_forward.4} parent=5 // pred_fallthru
      _
    %p124 = scmp.lt.s32.totalorder %s9, 2
    // Predicated region
    $region21: #{cnn_forward.4} parent=5 // pred_check
      %p125 = pneg %p124
    $region22: #{cnn_forward.4} parent=5 // pred_check_branch
      %127 = sbr.rel (%p125) target = $region24
    $region23: #{cnn_forward.4} parent=5 // pred_region
      // Predicated region
      $region25: #{cnn_forward.4} parent=23 // pred_check
        %p128 = pneg %p29
      $region26: #{cnn_forward.4} parent=23 // pred_check_branch
        %130 = sbr.rel (%p128) target = $region28
      $region27: #{cnn_forward.4} parent=23 // pred_region
        %s131 = smul.u32 32, %s9
        %p132 = scmp.lt.s32.totalorder %s131, 63
        %s133 = scalar_select %p132, %s131, 63
        %s134 = smul.addr %s133, 8
        %s135 = scalar_lea.vmem %s0, %s134
        %s136 = smul.u32 32, %s9
      $region28: #{cnn_forward.4} parent=23 // pred_fallthru
        _
    $region24: #{cnn_forward.4} parent=5 // pred_fallthru
      _
    %p137 = scmp.le.s32.totalorder 1, %s9
    %p138 = scmp.lt.s32.totalorder %s9, 3
    %p139 = pnand %p137, %p138
    %p140 = pneg %p139
    // Predicated region
    $region29: #{cnn_forward.4} parent=5 // pred_check
      _
    $region30: #{cnn_forward.4} parent=5 // pred_check_branch
      %142 = sbr.rel (%p139) target = $region32
    $region31: #{cnn_forward.4} parent=5 // pred_region
      %s143 = ssub.s32 %s9, 1
      %s144 = smul.u32 32, %s14
      %p145 = scmp.lt.s32.totalorder %s144, 63
      %s146 = scalar_select %p145, %s144, 63
      %s147 = smul.addr %s146, 8
      %s148 = scalar_lea.vmem %s0, %s147
      %p149 = pneg %p35
      %p150 = pneg %p32
      %p151 = pneg %p56
      %p152 = pneg %p53
      %p153 = pneg %p77
      %p154 = pneg %p74
      %p155 = pneg %p103
      %p156 = pneg %p100
      %s157 = smul.u32 32, %s14
      %p158 = scmp.lt.s32.totalorder %s157, 63
      %s159 = scalar_select %p158, %s157, 63
      %s160 = smul.addr %s159, 8
      %s161 = scalar_lea.vmem %s3, %s160
      %s162 = smul.u32 32, %s14
      %p163 = scmp.lt.s32.totalorder %s162, 63
      %s164 = scalar_select %p163, %s162, 63
      %s165 = smul.addr %s164, 8
      %s166 = scalar_lea.vmem %s0, %s165
      %s167 = smul.u32 32, %s14
      %s168 = smul.u32 32, %s14
      %p169 = scmp.lt.s32.totalorder %s168, 63
      %s170 = scalar_select %p169, %s168, 63
      %s171 = smul.addr %s170, 8
      %s172 = scalar_lea.vmem %s3, %s171
      %s173 = smul.u32 32, %s14
      %v174 = vld [vmem:[%s166] sm:$0xff]
      %v175 = vld [vmem:[%s166 + $0x8] sm:$0xff]
      %v176 = vld [vmem:[%s166 + $0x10] sm:$0xff]
      %v177 = vld [vmem:[%s166 + $0x18] sm:$0xff]
      %v178 = vld [vmem:[%s166 + $0x20] sm:$0xff]
      %v179 = vld [vmem:[%s166 + $0x28] sm:$0xff]
      %v180 = vld [vmem:[%s166 + $0x30] sm:$0xff]
      %v181 = vld [vmem:[%s166 + $0x38] sm:$0xff]
      %v182 = vld [vmem:[%s166 + $0x40] sm:$0xff]
      %v183 = vld [vmem:[%s166 + $0x48] sm:$0xff]
      %v184 = vld [vmem:[%s166 + $0x50] sm:$0xff]
      %v185 = vld [vmem:[%s166 + $0x58] sm:$0xff]
      %v186 = vld [vmem:[%s166 + $0x60] sm:$0xff]
      %v187 = vld [vmem:[%s166 + $0x68] sm:$0xff]
      %v188 = vld [vmem:[%s166 + $0x70] sm:$0xff]
      %v189 = vld [vmem:[%s166 + $0x78] sm:$0xff]
      %v190 = vld [vmem:[%s166 + $0x80] sm:$0xff]
      %v191 = vld [vmem:[%s166 + $0x88] sm:$0xff]
      %v192 = vld [vmem:[%s166 + $0x90] sm:$0xff]
      %v193 = vld [vmem:[%s166 + $0x98] sm:$0xff]
      %v194 = vld [vmem:[%s166 + $0xa0] sm:$0xff]
      %v195 = vld [vmem:[%s166 + $0xa8] sm:$0xff]
      %v196 = vld [vmem:[%s166 + $0xb0] sm:$0xff]
      %v197 = vld [vmem:[%s166 + $0xb8] sm:$0xff]
      %v198 = vld [vmem:[%s166 + $0xc0] sm:$0xff]
      %v199 = vld [vmem:[%s166 + $0xc8] sm:$0xff]
      %v200 = vld [vmem:[%s166 + $0xd0] sm:$0xff]
      %v201 = vld [vmem:[%s166 + $0xd8] sm:$0xff]
      %v202 = vld [vmem:[%s166 + $0xe0] sm:$0xff]
      %v203 = vld [vmem:[%s166 + $0xe8] sm:$0xff]
      %v204 = vld [vmem:[%s166 + $0xf0] sm:$0xff]
      %v205 = vld [vmem:[%s166 + $0xf8] sm:$0xff]
      %v206 = vld [vmem:[%s1] sm:$0xff]
      %v207 = vld [vmem:[%s1 + $0x8] sm:$0xff]
      %v208 = vld [vmem:[%s1 + $0x10] sm:$0xff]
      %v209 = vld [vmem:[%s1 + $0x18] sm:$0xff]
      %v210 = vld [vmem:[%s1 + $0x20] sm:$0xff]
      %v211 = vld [vmem:[%s1 + $0x28] sm:$0xff]
      %v212 = vld [vmem:[%s1 + $0x30] sm:$0xff]
      %v213 = vld [vmem:[%s1 + $0x38] sm:$0xff]
      %v214 = vld [vmem:[%s1 + $0x40] sm:$0xff]
      %v215 = vld [vmem:[%s2] sm:$0x1]
      %v217 = vlaneseq
      %v218 = vshrl.u32 %v217, 7
      %v219 = vsub.s32 0, %v218
      %v220 = vrot.slane %v215, %v219
      %vm222 = vcmask 588800
      %v224 = vsel %vm222, %v174, 0
      %v227 = vsel %vm222, %v175, 0
      %v230 = vsel %vm222, %v176, 0
      %v233 = vsel %vm222, %v177, 0
      %v236 = vsel %vm222, %v178, 0
      %v239 = vsel %vm222, %v179, 0
      %v242 = vsel %vm222, %v180, 0
      %v245 = vsel %vm222, %v181, 0
      %v248 = vsel %vm222, %v182, 0
      %v251 = vsel %vm222, %v183, 0
      %v254 = vsel %vm222, %v184, 0
      %v257 = vsel %vm222, %v185, 0
      %v260 = vsel %vm222, %v186, 0
      %v263 = vsel %vm222, %v187, 0
      %v266 = vsel %vm222, %v188, 0
      %v269 = vsel %vm222, %v189, 0
      %v272 = vsel %vm222, %v190, 0
      %v275 = vsel %vm222, %v191, 0
      %v278 = vsel %vm222, %v192, 0
      %v281 = vsel %vm222, %v193, 0
      %v284 = vsel %vm222, %v194, 0
      %v287 = vsel %vm222, %v195, 0
      %v290 = vsel %vm222, %v196, 0
      %v293 = vsel %vm222, %v197, 0
      %v296 = vsel %vm222, %v198, 0
      %v299 = vsel %vm222, %v199, 0
      %v302 = vsel %vm222, %v200, 0
      %v305 = vsel %vm222, %v201, 0
      %v308 = vsel %vm222, %v202, 0
      %v311 = vsel %vm222, %v203, 0
      %v314 = vsel %vm222, %v204, 0
      %v317 = vsel %vm222, %v205, 0
      %319 = vmatprep.subr.mxu0 0.0
      %320 = vmatpush1.msra.mxu0 0.0
      %321 = vmatprep.subr.mxu0 0.0
      %322 = vmatpush1.msra.mxu0 0.0
      %323 = vmatprep.subr.mxu0 0.0
      %324 = vmatpush1.msra.mxu0 0.0
      %325 = vmatprep.subr.mxu0 0.0
      %326 = vmatpush1.msra.mxu0 0.0
      %327 = vmatprep.subr.mxu0 0.0
      %328 = vmatpush1.msra.mxu0 0.0
      %329 = vmatprep.subr.mxu0 0.0
      %330 = vmatpush1.msra.mxu0 0.0
      %331 = vmatprep.subr.mxu0 0.0
      %332 = vmatpush1.msra.mxu0 0.0
      %333 = vmatprep.subr.mxu0 0.0
      %334 = vmatpush1.msra.mxu0 %v214
      %335 = vmatprep.subr.mxu0 0.0
      %336 = vmatpush1.msra.mxu0 %v213
      %337 = vmatprep.subr.mxu0 0.0
      %338 = vmatpush1.msra.mxu0 %v212
      %339 = vmatprep.subr.mxu0 0.0
      %340 = vmatpush1.msra.mxu0 %v211
      %341 = vmatprep.subr.mxu0 0.0
      %342 = vmatpush1.msra.mxu0 %v210
      %343 = vmatprep.subr.mxu0 0.0
      %344 = vmatpush1.msra.mxu0 %v209
      %345 = vmatprep.subr.mxu0 0.0
      %346 = vmatpush1.msra.mxu0 %v208
      %347 = vmatprep.subr.mxu0 0.0
      %348 = vmatpush1.msra.mxu0 %v207
      %349 = vmatprep.subr.mxu0 0.0
      %350 = vmatpush1.msra.mxu0 %v206
      %351 = vmatprep.subr.mxu0 0.0
      %352 = vmatpush2.msra.mxu0 0.0
      %353 = vmatprep.subr.mxu0 0.0
      %354 = vmatpush2.msra.mxu0 0.0
      %355 = vmatprep.subr.mxu0 0.0
      %356 = vmatpush2.msra.mxu0 0.0
      %357 = vmatprep.subr.mxu0 0.0
      %358 = vmatpush2.msra.mxu0 0.0
      %359 = vmatprep.subr.mxu0 0.0
      %360 = vmatpush2.msra.mxu0 0.0
      %361 = vmatprep.subr.mxu0 0.0
      %362 = vmatpush2.msra.mxu0 0.0
      %363 = vmatprep.subr.mxu0 0.0
      %364 = vmatpush2.msra.mxu0 0.0
      %365 = vmatprep.subr.mxu0 0.0
      %366 = vmatpush2.msra.mxu0 0.0
      %367 = vmatprep.subr.mxu0 0.0
      %368 = vmatpush2.msra.mxu0 0.0
      %369 = vmatprep.subr.mxu0 0.0
      %370 = vmatpush2.msra.mxu0 0.0
      %371 = vmatprep.subr.mxu0 0.0
      %372 = vmatpush2.msra.mxu0 0.0
      %373 = vmatprep.subr.mxu0 0.0
      %374 = vmatpush2.msra.mxu0 0.0
      %375 = vmatprep.subr.mxu0 0.0
      %376 = vmatpush2.msra.mxu0 0.0
      %377 = vmatprep.subr.mxu0 0.0
      %378 = vmatpush2.msra.mxu0 0.0
      %379 = vmatprep.subr.mxu0 0.0
      %380 = vmatpush2.msra.mxu0 0.0
      %381 = vmatprep.subr.mxu0 0.0
      %382 = vmatpush2.msra.mxu0 0.0
      %383 = vmatprep.mubr.f32.mxu0 0.0
      %384 = vmatmul.mubr.f32.gmra.mxu0 %v224
      %v385 = vpop.f32.mrf.mxu0
      %v386 = vadd.f32 %v220, %v385
      %v387 = vpop.f32.mrf.mxu0
      %388 = vmatprep.mubr.f32.mxu0 0.0
      %389 = vmatmul.mubr.f32.gmra.mxu0 %v227
      %v390 = vpop.f32.mrf.mxu0
      %v391 = vadd.f32 %v220, %v390
      %v392 = vpop.f32.mrf.mxu0
      %393 = vmatprep.mubr.f32.mxu0 0.0
      %394 = vmatmul.mubr.f32.gmra.mxu0 %v230
      %v395 = vpop.f32.mrf.mxu0
      %v396 = vadd.f32 %v220, %v395
      %v397 = vpop.f32.mrf.mxu0
      %398 = vmatprep.mubr.f32.mxu0 0.0
      %399 = vmatmul.mubr.f32.gmra.mxu0 %v233
      %v400 = vpop.f32.mrf.mxu0
      %v401 = vadd.f32 %v220, %v400
      %v402 = vpop.f32.mrf.mxu0
      %403 = vmatprep.mubr.f32.mxu0 0.0
      %404 = vmatmul.mubr.f32.gmra.mxu0 %v236
      %v405 = vpop.f32.mrf.mxu0
      %v406 = vadd.f32 %v220, %v405
      %v407 = vpop.f32.mrf.mxu0
      %408 = vmatprep.mubr.f32.mxu0 0.0
      %409 = vmatmul.mubr.f32.gmra.mxu0 %v239
      %v410 = vpop.f32.mrf.mxu0
      %v411 = vadd.f32 %v220, %v410
      %v412 = vpop.f32.mrf.mxu0
      %413 = vmatprep.mubr.f32.mxu0 0.0
      %414 = vmatmul.mubr.f32.gmra.mxu0 %v242
      %v415 = vpop.f32.mrf.mxu0
      %v416 = vadd.f32 %v220, %v415
      %v417 = vpop.f32.mrf.mxu0
      %418 = vmatprep.mubr.f32.mxu0 0.0
      %419 = vmatmul.mubr.f32.gmra.mxu0 %v245
      %v420 = vpop.f32.mrf.mxu0
      %v421 = vadd.f32 %v220, %v420
      %v422 = vpop.f32.mrf.mxu0
      %423 = vmatprep.mubr.f32.mxu0 0.0
      %424 = vmatmul.mubr.f32.gmra.mxu0 %v248
      %v425 = vpop.f32.mrf.mxu0
      %v426 = vadd.f32 %v220, %v425
      %v427 = vpop.f32.mrf.mxu0
      %428 = vmatprep.mubr.f32.mxu0 0.0
      %429 = vmatmul.mubr.f32.gmra.mxu0 %v251
      %v430 = vpop.f32.mrf.mxu0
      %v431 = vadd.f32 %v220, %v430
      %v432 = vpop.f32.mrf.mxu0
      %433 = vmatprep.mubr.f32.mxu0 0.0
      %434 = vmatmul.mubr.f32.gmra.mxu0 %v254
      %v435 = vpop.f32.mrf.mxu0
      %v436 = vadd.f32 %v220, %v435
      %v437 = vpop.f32.mrf.mxu0
      %438 = vmatprep.mubr.f32.mxu0 0.0
      %439 = vmatmul.mubr.f32.gmra.mxu0 %v257
      %v440 = vpop.f32.mrf.mxu0
      %v441 = vadd.f32 %v220, %v440
      %v442 = vpop.f32.mrf.mxu0
      %443 = vmatprep.mubr.f32.mxu0 0.0
      %444 = vmatmul.mubr.f32.gmra.mxu0 %v260
      %v445 = vpop.f32.mrf.mxu0
      %v446 = vadd.f32 %v220, %v445
      %v447 = vpop.f32.mrf.mxu0
      %448 = vmatprep.mubr.f32.mxu0 0.0
      %449 = vmatmul.mubr.f32.gmra.mxu0 %v263
      %v450 = vpop.f32.mrf.mxu0
      %v451 = vadd.f32 %v220, %v450
      %v452 = vpop.f32.mrf.mxu0
      %453 = vmatprep.mubr.f32.mxu0 0.0
      %454 = vmatmul.mubr.f32.gmra.mxu0 %v266
      %v455 = vpop.f32.mrf.mxu0
      %v456 = vadd.f32 %v220, %v455
      %v457 = vpop.f32.mrf.mxu0
      %458 = vmatprep.mubr.f32.mxu0 0.0
      %459 = vmatmul.mubr.f32.gmra.mxu0 %v269
      %v460 = vpop.f32.mrf.mxu0
      %v461 = vadd.f32 %v220, %v460
      %v462 = vpop.f32.mrf.mxu0
      %463 = vmatprep.mubr.f32.mxu0 0.0
      %464 = vmatmul.mubr.f32.gmra.mxu0 %v272
      %v465 = vpop.f32.mrf.mxu0
      %v466 = vadd.f32 %v220, %v465
      %v467 = vpop.f32.mrf.mxu0
      %468 = vmatprep.mubr.f32.mxu0 0.0
      %469 = vmatmul.mubr.f32.gmra.mxu0 %v275
      %v470 = vpop.f32.mrf.mxu0
      %v471 = vadd.f32 %v220, %v470
      %v472 = vpop.f32.mrf.mxu0
      %473 = vmatprep.mubr.f32.mxu0 0.0
      %474 = vmatmul.mubr.f32.gmra.mxu0 %v278
      %v475 = vpop.f32.mrf.mxu0
      %v476 = vadd.f32 %v220, %v475
      %v477 = vpop.f32.mrf.mxu0
      %478 = vmatprep.mubr.f32.mxu0 0.0
      %479 = vmatmul.mubr.f32.gmra.mxu0 %v281
      %v480 = vpop.f32.mrf.mxu0
      %v481 = vadd.f32 %v220, %v480
      %v482 = vpop.f32.mrf.mxu0
      %483 = vmatprep.mubr.f32.mxu0 0.0
      %484 = vmatmul.mubr.f32.gmra.mxu0 %v284
      %v485 = vpop.f32.mrf.mxu0
      %v486 = vadd.f32 %v220, %v485
      %v487 = vpop.f32.mrf.mxu0
      %488 = vmatprep.mubr.f32.mxu0 0.0
      %489 = vmatmul.mubr.f32.gmra.mxu0 %v287
      %v490 = vpop.f32.mrf.mxu0
      %v491 = vadd.f32 %v220, %v490
      %v492 = vpop.f32.mrf.mxu0
      %493 = vmatprep.mubr.f32.mxu0 0.0
      %494 = vmatmul.mubr.f32.gmra.mxu0 %v290
      %v495 = vpop.f32.mrf.mxu0
      %v496 = vadd.f32 %v220, %v495
      %v497 = vpop.f32.mrf.mxu0
      %498 = vmatprep.mubr.f32.mxu0 0.0
      %499 = vmatmul.mubr.f32.gmra.mxu0 %v293
      %v500 = vpop.f32.mrf.mxu0
      %v501 = vadd.f32 %v220, %v500
      %v502 = vpop.f32.mrf.mxu0
      %503 = vmatprep.mubr.f32.mxu0 0.0
      %504 = vmatmul.mubr.f32.gmra.mxu0 %v296
      %v505 = vpop.f32.mrf.mxu0
      %v506 = vadd.f32 %v220, %v505
      %v507 = vpop.f32.mrf.mxu0
      %508 = vmatprep.mubr.f32.mxu0 0.0
      %509 = vmatmul.mubr.f32.gmra.mxu0 %v299
      %v510 = vpop.f32.mrf.mxu0
      %v511 = vadd.f32 %v220, %v510
      %v512 = vpop.f32.mrf.mxu0
      %513 = vmatprep.mubr.f32.mxu0 0.0
      %514 = vmatmul.mubr.f32.gmra.mxu0 %v302
      %v515 = vpop.f32.mrf.mxu0
      %v516 = vadd.f32 %v220, %v515
      %v517 = vpop.f32.mrf.mxu0
      %518 = vmatprep.mubr.f32.mxu0 0.0
      %519 = vmatmul.mubr.f32.gmra.mxu0 %v305
      %v520 = vpop.f32.mrf.mxu0
      %v521 = vadd.f32 %v220, %v520
      %v522 = vpop.f32.mrf.mxu0
      %523 = vmatprep.mubr.f32.mxu0 0.0
      %524 = vmatmul.mubr.f32.gmra.mxu0 %v308
      %v525 = vpop.f32.mrf.mxu0
      %v526 = vadd.f32 %v220, %v525
      %v527 = vpop.f32.mrf.mxu0
      %528 = vmatprep.mubr.f32.mxu0 0.0
      %529 = vmatmul.mubr.f32.gmra.mxu0 %v311
      %v530 = vpop.f32.mrf.mxu0
      %v531 = vadd.f32 %v220, %v530
      %v532 = vpop.f32.mrf.mxu0
      %533 = vmatprep.mubr.f32.mxu0 0.0
      %534 = vmatmul.mubr.f32.gmra.mxu0 %v314
      %v535 = vpop.f32.mrf.mxu0
      %v536 = vadd.f32 %v220, %v535
      %v537 = vpop.f32.mrf.mxu0
      %538 = vmatprep.mubr.f32.mxu0 0.0
      %539 = vmatmul.mubr.f32.gmra.mxu0 %v317
      %v540 = vpop.f32.mrf.mxu0
      %v541 = vadd.f32 %v220, %v540
      %v542 = vpop.f32.mrf.mxu0
      %543 = vdwg.mxu0
      %v544 = vmax.f32 %v386, 0.0
      %v545 = vmax.f32 %v391, 0.0
      %v546 = vmax.f32 %v396, 0.0
      %v547 = vmax.f32 %v401, 0.0
      %v548 = vmax.f32 %v406, 0.0
      %v549 = vmax.f32 %v411, 0.0
      %v550 = vmax.f32 %v416, 0.0
      %v551 = vmax.f32 %v421, 0.0
      %v552 = vmax.f32 %v426, 0.0
      %v553 = vmax.f32 %v431, 0.0
      %v554 = vmax.f32 %v436, 0.0
      %v555 = vmax.f32 %v441, 0.0
      %v556 = vmax.f32 %v446, 0.0
      %v557 = vmax.f32 %v451, 0.0
      %v558 = vmax.f32 %v456, 0.0
      %v559 = vmax.f32 %v461, 0.0
      %v560 = vmax.f32 %v466, 0.0
      %v561 = vmax.f32 %v471, 0.0
      %v562 = vmax.f32 %v476, 0.0
      %v563 = vmax.f32 %v481, 0.0
      %v564 = vmax.f32 %v486, 0.0
      %v565 = vmax.f32 %v491, 0.0
      %v566 = vmax.f32 %v496, 0.0
      %v567 = vmax.f32 %v501, 0.0
      %v568 = vmax.f32 %v506, 0.0
      %v569 = vmax.f32 %v511, 0.0
      %v570 = vmax.f32 %v516, 0.0
      %v571 = vmax.f32 %v521, 0.0
      %v572 = vmax.f32 %v526, 0.0
      %v573 = vmax.f32 %v531, 0.0
      %v574 = vmax.f32 %v536, 0.0
      %v575 = vmax.f32 %v541, 0.0
      %vm576 = vcmask 64512
      %577 = vst.msk [vmem:[%s172] sm:$0xff] %vm576, %v544
      %578 = vst.msk [vmem:[%s172 + $0x8] sm:$0xff] %vm576, %v545
      %579 = vst.msk [vmem:[%s172 + $0x10] sm:$0xff] %vm576, %v546
      %580 = vst.msk [vmem:[%s172 + $0x18] sm:$0xff] %vm576, %v547
      %581 = vst.msk [vmem:[%s172 + $0x20] sm:$0xff] %vm576, %v548
      %582 = vst.msk [vmem:[%s172 + $0x28] sm:$0xff] %vm576, %v549
      %583 = vst.msk [vmem:[%s172 + $0x30] sm:$0xff] %vm576, %v550
      %584 = vst.msk [vmem:[%s172 + $0x38] sm:$0xff] %vm576, %v551
      %585 = vst.msk [vmem:[%s172 + $0x40] sm:$0xff] %vm576, %v552
      %586 = vst.msk [vmem:[%s172 + $0x48] sm:$0xff] %vm576, %v553
      %587 = vst.msk [vmem:[%s172 + $0x50] sm:$0xff] %vm576, %v554
      %588 = vst.msk [vmem:[%s172 + $0x58] sm:$0xff] %vm576, %v555
      %589 = vst.msk [vmem:[%s172 + $0x60] sm:$0xff] %vm576, %v556
      %590 = vst.msk [vmem:[%s172 + $0x68] sm:$0xff] %vm576, %v557
      %591 = vst.msk [vmem:[%s172 + $0x70] sm:$0xff] %vm576, %v558
      %592 = vst.msk [vmem:[%s172 + $0x78] sm:$0xff] %vm576, %v559
      %593 = vst.msk [vmem:[%s172 + $0x80] sm:$0xff] %vm576, %v560
      %594 = vst.msk [vmem:[%s172 + $0x88] sm:$0xff] %vm576, %v561
      %595 = vst.msk [vmem:[%s172 + $0x90] sm:$0xff] %vm576, %v562
      %596 = vst.msk [vmem:[%s172 + $0x98] sm:$0xff] %vm576, %v563
      %597 = vst.msk [vmem:[%s172 + $0xa0] sm:$0xff] %vm576, %v564
      %598 = vst.msk [vmem:[%s172 + $0xa8] sm:$0xff] %vm576, %v565
      %599 = vst.msk [vmem:[%s172 + $0xb0] sm:$0xff] %vm576, %v566
      %600 = vst.msk [vmem:[%s172 + $0xb8] sm:$0xff] %vm576, %v567
      %601 = vst.msk [vmem:[%s172 + $0xc0] sm:$0xff] %vm576, %v568
      %602 = vst.msk [vmem:[%s172 + $0xc8] sm:$0xff] %vm576, %v569
      %603 = vst.msk [vmem:[%s172 + $0xd0] sm:$0xff] %vm576, %v570
      %604 = vst.msk [vmem:[%s172 + $0xd8] sm:$0xff] %vm576, %v571
      %605 = vst.msk [vmem:[%s172 + $0xe0] sm:$0xff] %vm576, %v572
      %606 = vst.msk [vmem:[%s172 + $0xe8] sm:$0xff] %vm576, %v573
      %607 = vst.msk [vmem:[%s172 + $0xf0] sm:$0xff] %vm576, %v574
      %608 = vst.msk [vmem:[%s172 + $0xf8] sm:$0xff] %vm576, %v575
      %s609 = smul.u32 32, %s14
      %p610 = scmp.lt.s32.totalorder %s609, 63
      %s611 = scalar_select %p610, %s609, 63
      %s612 = smul.addr %s611, 8
      %s613 = scalar_lea.vmem %s3, %s612
      // Predicated region
      $region33: #{cnn_forward.4} parent=31 // pred_check
        %p614 = pneg %p100
      $region34: #{cnn_forward.4} parent=31 // pred_check_branch
        %616 = sbr.rel (%p614) target = $region36
      $region35: #{cnn_forward.4} parent=31 // pred_region
        %s617 = smul.u32 32, %s14
      $region36: #{cnn_forward.4} parent=31 // pred_fallthru
        _
    $region32: #{cnn_forward.4} parent=5 // pred_fallthru
      _
    %p618 = scmp.le.s32.totalorder 2, %s9
    // Predicated region
    $region37: #{cnn_forward.4} parent=5 // pred_check
      %p619 = pneg %p618
    $region38: #{cnn_forward.4} parent=5 // pred_check_branch
      %621 = sbr.rel (%p619) target = $region40
    $region39: #{cnn_forward.4} parent=5 // pred_region
      %s622 = ssub.s32 %s9, 2
      // Predicated region
      $region41: #{cnn_forward.4} parent=39 // pred_check
        %p623 = pneg %p106
      $region42: #{cnn_forward.4} parent=39 // pred_check_branch
        %625 = sbr.rel (%p623) target = $region44
      $region43: #{cnn_forward.4} parent=39 // pred_region
        %s626 = smul.u32 32, %s15
        %p627 = scmp.lt.s32.totalorder %s626, 63
        %s628 = scalar_select %p627, %s626, 63
        %s629 = smul.addr %s628, 8
        %s630 = scalar_lea.vmem %s3, %s629
      $region44: #{cnn_forward.4} parent=39 // pred_fallthru
        _
    $region40: #{cnn_forward.4} parent=5 // pred_fallthru
      _
  $region6: #{cnn_forward.4} parent=0 // loop_footer
    %s13 = sadd.s32 1, %s9
  $region7: #{cnn_forward.4} parent=0 // loop_footer_branch
    %8 = sbr.rel target = $region3
  $region8: #{cnn_forward.4} parent=0 // loop_exit
    _

// kernel: cnn_forward.5
$region0: #{cnn_forward.5}
  #allocation0 [shape = 'u32[]', space=smem, size = 0x4, offset = 0x4, fixed_abs, tag = 'smem constant byte address 0x4 - core index']
  #allocation1 [shape = 'u32[144,128]{1,0:T(1,128)}', space=vmem, size = 0x12000, scoped, tag = 'internal scratch']
  %s0 = inlined_call_operand.vmem [shape: f32[256,72], index: 0, kind: input, shape index: {}]
  %s1 = inlined_call_operand.vmem [shape: f32[72,4], index: 1, kind: input, shape index: {}]
  %s2 = inlined_call_operand.vmem [shape: f32[1,4], index: 2, kind: input, shape index: {}]
  %s3 = inlined_call_operand.vmem [shape: f32[256,4], index: 3, kind: output, shape index: {}]
  %s4 = sld [smem:[#allocation0]]
  $region22: #{cnn_forward.5} parent=0
    _
  %s6 = ssub.s32 1, %s4
  %s7 = scalar_select 0, %s6, %s4
  // Predicated region
  $region2: #{cnn_forward.5} parent=0 // pred_check
    _
  $region3: #{cnn_forward.5} parent=0 // pred_check_branch
    %9 = sbr.rel (0) target = $region5
  $region4: #{cnn_forward.5} parent=0 // pred_region
    _
  $region5: #{cnn_forward.5} parent=0 // pred_fallthru
    _
  // Predicated region
  $region6: #{cnn_forward.5} parent=0 // pred_check
    _
  $region7: #{cnn_forward.5} parent=0 // pred_check_branch
    %11 = sbr.rel (0) target = $region9
  $region8: #{cnn_forward.5} parent=0 // pred_region
    _
  $region9: #{cnn_forward.5} parent=0 // pred_fallthru
    _
  // Predicated region
  $region10: #{cnn_forward.5} parent=0 // pred_check
    _
  $region11: #{cnn_forward.5} parent=0 // pred_check_branch
    %13 = sbr.rel (0) target = $region13
  $region12: #{cnn_forward.5} parent=0 // pred_region
    _
  $region13: #{cnn_forward.5} parent=0 // pred_fallthru
    _
  %v14 = vld [vmem:[%s0] sm:$0xff]
  %v15 = vld [vmem:[%s0 + $0x8] sm:$0xff]
  %v16 = vld [vmem:[%s0 + $0x10] sm:$0xff]
  %v17 = vld [vmem:[%s0 + $0x18] sm:$0xff]
  %v18 = vld [vmem:[%s0 + $0x20] sm:$0xff]
  %v19 = vld [vmem:[%s0 + $0x28] sm:$0xff]
  %v20 = vld [vmem:[%s0 + $0x30] sm:$0xff]
  %v21 = vld [vmem:[%s0 + $0x38] sm:$0xff]
  %v22 = vld [vmem:[%s0 + $0x40] sm:$0xff]
  %v23 = vld [vmem:[%s0 + $0x48] sm:$0xff]
  %v24 = vld [vmem:[%s0 + $0x50] sm:$0xff]
  %v25 = vld [vmem:[%s0 + $0x58] sm:$0xff]
  %v26 = vld [vmem:[%s0 + $0x60] sm:$0xff]
  %v27 = vld [vmem:[%s0 + $0x68] sm:$0xff]
  %v28 = vld [vmem:[%s0 + $0x70] sm:$0xff]
  %v29 = vld [vmem:[%s0 + $0x78] sm:$0xff]
  %v30 = vld [vmem:[%s0 + $0x80] sm:$0xff]
  %v31 = vld [vmem:[%s0 + $0x88] sm:$0xff]
  %v32 = vld [vmem:[%s0 + $0x90] sm:$0xff]
  %v33 = vld [vmem:[%s0 + $0x98] sm:$0xff]
  %v34 = vld [vmem:[%s0 + $0xa0] sm:$0xff]
  %v35 = vld [vmem:[%s0 + $0xa8] sm:$0xff]
  %v36 = vld [vmem:[%s0 + $0xb0] sm:$0xff]
  %v37 = vld [vmem:[%s0 + $0xb8] sm:$0xff]
  %v38 = vld [vmem:[%s0 + $0xc0] sm:$0xff]
  %v39 = vld [vmem:[%s0 + $0xc8] sm:$0xff]
  %v40 = vld [vmem:[%s0 + $0xd0] sm:$0xff]
  %v41 = vld [vmem:[%s0 + $0xd8] sm:$0xff]
  %v42 = vld [vmem:[%s0 + $0xe0] sm:$0xff]
  %v43 = vld [vmem:[%s0 + $0xe8] sm:$0xff]
  %v44 = vld [vmem:[%s0 + $0xf0] sm:$0xff]
  %v45 = vld [vmem:[%s0 + $0xf8] sm:$0xff]
  %v46 = vld [vmem:[%s1] sm:$0xff]
  %v47 = vld [vmem:[%s1 + $0x8] sm:$0xff]
  %v48 = vld [vmem:[%s1 + $0x10] sm:$0xff]
  %v49 = vld [vmem:[%s1 + $0x18] sm:$0xff]
  %v50 = vld [vmem:[%s1 + $0x20] sm:$0xff]
  %v51 = vld [vmem:[%s1 + $0x28] sm:$0xff]
  %v52 = vld [vmem:[%s1 + $0x30] sm:$0xff]
  %v53 = vld [vmem:[%s1 + $0x38] sm:$0xff]
  %v54 = vld [vmem:[%s1 + $0x40] sm:$0xff]
  %v55 = vld [vmem:[%s2] sm:$0x1]
  %v57 = vlaneseq
  %v58 = vshrl.u32 %v57, 7
  %v59 = vsub.s32 0, %v58
  %v60 = vrot.slane %v55, %v59
  %vm62 = vcmask 588800
  %v64 = vsel %vm62, %v14, 0
  %v67 = vsel %vm62, %v15, 0
  %v70 = vsel %vm62, %v16, 0
  %v73 = vsel %vm62, %v17, 0
  %v76 = vsel %vm62, %v18, 0
  %v79 = vsel %vm62, %v19, 0
  %v82 = vsel %vm62, %v20, 0
  %v85 = vsel %vm62, %v21, 0
  %v88 = vsel %vm62, %v22, 0
  %v91 = vsel %vm62, %v23, 0
  %v94 = vsel %vm62, %v24, 0
  %v97 = vsel %vm62, %v25, 0
  %v100 = vsel %vm62, %v26, 0
  %v103 = vsel %vm62, %v27, 0
  %v106 = vsel %vm62, %v28, 0
  %v109 = vsel %vm62, %v29, 0
  %v112 = vsel %vm62, %v30, 0
  %v115 = vsel %vm62, %v31, 0
  %v118 = vsel %vm62, %v32, 0
  %v121 = vsel %vm62, %v33, 0
  %v124 = vsel %vm62, %v34, 0
  %v127 = vsel %vm62, %v35, 0
  %v130 = vsel %vm62, %v36, 0
  %v133 = vsel %vm62, %v37, 0
  %v136 = vsel %vm62, %v38, 0
  %v139 = vsel %vm62, %v39, 0
  %v142 = vsel %vm62, %v40, 0
  %v145 = vsel %vm62, %v41, 0
  %v148 = vsel %vm62, %v42, 0
  %v151 = vsel %vm62, %v43, 0
  %v154 = vsel %vm62, %v44, 0
  %v157 = vsel %vm62, %v45, 0
  %159 = vmatprep.subr.mxu0 0.0
  %160 = vmatpush1.msra.mxu0 0.0
  %161 = vmatprep.subr.mxu0 0.0
  %162 = vmatpush1.msra.mxu0 0.0
  %163 = vmatprep.subr.mxu0 0.0
  %164 = vmatpush1.msra.mxu0 0.0
  %165 = vmatprep.subr.mxu0 0.0
  %166 = vmatpush1.msra.mxu0 0.0
  %167 = vmatprep.subr.mxu0 0.0
  %168 = vmatpush1.msra.mxu0 0.0
  %169 = vmatprep.subr.mxu0 0.0
  %170 = vmatpush1.msra.mxu0 0.0
  %171 = vmatprep.subr.mxu0 0.0
  %172 = vmatpush1.msra.mxu0 0.0
  %173 = vmatprep.subr.mxu0 0.0
  %174 = vmatpush1.msra.mxu0 %v54
  %175 = vmatprep.subr.mxu0 0.0
  %176 = vmatpush1.msra.mxu0 %v53
  %177 = vmatprep.subr.mxu0 0.0
  %178 = vmatpush1.msra.mxu0 %v52
  %179 = vmatprep.subr.mxu0 0.0
  %180 = vmatpush1.msra.mxu0 %v51
  %181 = vmatprep.subr.mxu0 0.0
  %182 = vmatpush1.msra.mxu0 %v50
  %183 = vmatprep.subr.mxu0 0.0
  %184 = vmatpush1.msra.mxu0 %v49
  %185 = vmatprep.subr.mxu0 0.0
  %186 = vmatpush1.msra.mxu0 %v48
  %187 = vmatprep.subr.mxu0 0.0
  %188 = vmatpush1.msra.mxu0 %v47
  %189 = vmatprep.subr.mxu0 0.0
  %190 = vmatpush1.msra.mxu0 %v46
  %191 = vmatprep.subr.mxu0 0.0
  %192 = vmatpush2.msra.mxu0 0.0
  %193 = vmatprep.subr.mxu0 0.0
  %194 = vmatpush2.msra.mxu0 0.0
  %195 = vmatprep.subr.mxu0 0.0
  %196 = vmatpush2.msra.mxu0 0.0
  %197 = vmatprep.subr.mxu0 0.0
  %198 = vmatpush2.msra.mxu0 0.0
  %199 = vmatprep.subr.mxu0 0.0
  %200 = vmatpush2.msra.mxu0 0.0
  %201 = vmatprep.subr.mxu0 0.0
  %202 = vmatpush2.msra.mxu0 0.0
  %203 = vmatprep.subr.mxu0 0.0
  %204 = vmatpush2.msra.mxu0 0.0
  %205 = vmatprep.subr.mxu0 0.0
  %206 = vmatpush2.msra.mxu0 0.0
  %207 = vmatprep.subr.mxu0 0.0
  %208 = vmatpush2.msra.mxu0 0.0
  %209 = vmatprep.subr.mxu0 0.0
  %210 = vmatpush2.msra.mxu0 0.0
  %211 = vmatprep.subr.mxu0 0.0
  %212 = vmatpush2.msra.mxu0 0.0
  %213 = vmatprep.subr.mxu0 0.0
  %214 = vmatpush2.msra.mxu0 0.0
  %215 = vmatprep.subr.mxu0 0.0
  %216 = vmatpush2.msra.mxu0 0.0
  %217 = vmatprep.subr.mxu0 0.0
  %218 = vmatpush2.msra.mxu0 0.0
  %219 = vmatprep.subr.mxu0 0.0
  %220 = vmatpush2.msra.mxu0 0.0
  %221 = vmatprep.subr.mxu0 0.0
  %222 = vmatpush2.msra.mxu0 0.0
  %223 = vmatprep.mubr.f32.mxu0 0.0
  %224 = vmatmul.mubr.f32.gmra.mxu0 %v64
  %v225 = vpop.f32.mrf.mxu0
  %v226 = vadd.f32 %v60, %v225
  %v227 = vpop.f32.mrf.mxu0
  %228 = vmatprep.mubr.f32.mxu0 0.0
  %229 = vmatmul.mubr.f32.gmra.mxu0 %v67
  %v230 = vpop.f32.mrf.mxu0
  %v231 = vadd.f32 %v60, %v230
  %v232 = vpop.f32.mrf.mxu0
  %233 = vmatprep.mubr.f32.mxu0 0.0
  %234 = vmatmul.mubr.f32.gmra.mxu0 %v70
  %v235 = vpop.f32.mrf.mxu0
  %v236 = vadd.f32 %v60, %v235
  %v237 = vpop.f32.mrf.mxu0
  %238 = vmatprep.mubr.f32.mxu0 0.0
  %239 = vmatmul.mubr.f32.gmra.mxu0 %v73
  %v240 = vpop.f32.mrf.mxu0
  %v241 = vadd.f32 %v60, %v240
  %v242 = vpop.f32.mrf.mxu0
  %243 = vmatprep.mubr.f32.mxu0 0.0
  %244 = vmatmul.mubr.f32.gmra.mxu0 %v76
  %v245 = vpop.f32.mrf.mxu0
  %v246 = vadd.f32 %v60, %v245
  %v247 = vpop.f32.mrf.mxu0
  %248 = vmatprep.mubr.f32.mxu0 0.0
  %249 = vmatmul.mubr.f32.gmra.mxu0 %v79
  %v250 = vpop.f32.mrf.mxu0
  %v251 = vadd.f32 %v60, %v250
  %v252 = vpop.f32.mrf.mxu0
  %253 = vmatprep.mubr.f32.mxu0 0.0
  %254 = vmatmul.mubr.f32.gmra.mxu0 %v82
  %v255 = vpop.f32.mrf.mxu0
  %v256 = vadd.f32 %v60, %v255
  %v257 = vpop.f32.mrf.mxu0
  %258 = vmatprep.mubr.f32.mxu0 0.0
  %259 = vmatmul.mubr.f32.gmra.mxu0 %v85
  %v260 = vpop.f32.mrf.mxu0
  %v261 = vadd.f32 %v60, %v260
  %v262 = vpop.f32.mrf.mxu0
  %263 = vmatprep.mubr.f32.mxu0 0.0
  %264 = vmatmul.mubr.f32.gmra.mxu0 %v88
  %v265 = vpop.f32.mrf.mxu0
  %v266 = vadd.f32 %v60, %v265
  %v267 = vpop.f32.mrf.mxu0
  %268 = vmatprep.mubr.f32.mxu0 0.0
  %269 = vmatmul.mubr.f32.gmra.mxu0 %v91
  %v270 = vpop.f32.mrf.mxu0
  %v271 = vadd.f32 %v60, %v270
  %v272 = vpop.f32.mrf.mxu0
  %273 = vmatprep.mubr.f32.mxu0 0.0
  %274 = vmatmul.mubr.f32.gmra.mxu0 %v94
  %v275 = vpop.f32.mrf.mxu0
  %v276 = vadd.f32 %v60, %v275
  %v277 = vpop.f32.mrf.mxu0
  %278 = vmatprep.mubr.f32.mxu0 0.0
  %279 = vmatmul.mubr.f32.gmra.mxu0 %v97
  %v280 = vpop.f32.mrf.mxu0
  %v281 = vadd.f32 %v60, %v280
  %v282 = vpop.f32.mrf.mxu0
  %283 = vmatprep.mubr.f32.mxu0 0.0
  %284 = vmatmul.mubr.f32.gmra.mxu0 %v100
  %v285 = vpop.f32.mrf.mxu0
  %v286 = vadd.f32 %v60, %v285
  %v287 = vpop.f32.mrf.mxu0
  %288 = vmatprep.mubr.f32.mxu0 0.0
  %289 = vmatmul.mubr.f32.gmra.mxu0 %v103
  %v290 = vpop.f32.mrf.mxu0
  %v291 = vadd.f32 %v60, %v290
  %v292 = vpop.f32.mrf.mxu0
  %293 = vmatprep.mubr.f32.mxu0 0.0
  %294 = vmatmul.mubr.f32.gmra.mxu0 %v106
  %v295 = vpop.f32.mrf.mxu0
  %v296 = vadd.f32 %v60, %v295
  %v297 = vpop.f32.mrf.mxu0
  %298 = vmatprep.mubr.f32.mxu0 0.0
  %299 = vmatmul.mubr.f32.gmra.mxu0 %v109
  %v300 = vpop.f32.mrf.mxu0
  %v301 = vadd.f32 %v60, %v300
  %v302 = vpop.f32.mrf.mxu0
  %303 = vmatprep.mubr.f32.mxu0 0.0
  %304 = vmatmul.mubr.f32.gmra.mxu0 %v112
  %v305 = vpop.f32.mrf.mxu0
  %v306 = vadd.f32 %v60, %v305
  %v307 = vpop.f32.mrf.mxu0
  %308 = vmatprep.mubr.f32.mxu0 0.0
  %309 = vmatmul.mubr.f32.gmra.mxu0 %v115
  %v310 = vpop.f32.mrf.mxu0
  %v311 = vadd.f32 %v60, %v310
  %v312 = vpop.f32.mrf.mxu0
  %313 = vmatprep.mubr.f32.mxu0 0.0
  %314 = vmatmul.mubr.f32.gmra.mxu0 %v118
  %v315 = vpop.f32.mrf.mxu0
  %v316 = vadd.f32 %v60, %v315
  %v317 = vpop.f32.mrf.mxu0
  %318 = vmatprep.mubr.f32.mxu0 0.0
  %319 = vmatmul.mubr.f32.gmra.mxu0 %v121
  %v320 = vpop.f32.mrf.mxu0
  %v321 = vadd.f32 %v60, %v320
  %v322 = vpop.f32.mrf.mxu0
  %323 = vmatprep.mubr.f32.mxu0 0.0
  %324 = vmatmul.mubr.f32.gmra.mxu0 %v124
  %v325 = vpop.f32.mrf.mxu0
  %v326 = vadd.f32 %v60, %v325
  %v327 = vpop.f32.mrf.mxu0
  %328 = vmatprep.mubr.f32.mxu0 0.0
  %329 = vmatmul.mubr.f32.gmra.mxu0 %v127
  %v330 = vpop.f32.mrf.mxu0
  %v331 = vadd.f32 %v60, %v330
  %v332 = vpop.f32.mrf.mxu0
  %333 = vmatprep.mubr.f32.mxu0 0.0
  %334 = vmatmul.mubr.f32.gmra.mxu0 %v130
  %v335 = vpop.f32.mrf.mxu0
  %v336 = vadd.f32 %v60, %v335
  %v337 = vpop.f32.mrf.mxu0
  %338 = vmatprep.mubr.f32.mxu0 0.0
  %339 = vmatmul.mubr.f32.gmra.mxu0 %v133
  %v340 = vpop.f32.mrf.mxu0
  %v341 = vadd.f32 %v60, %v340
  %v342 = vpop.f32.mrf.mxu0
  %343 = vmatprep.mubr.f32.mxu0 0.0
  %344 = vmatmul.mubr.f32.gmra.mxu0 %v136
  %v345 = vpop.f32.mrf.mxu0
  %v346 = vadd.f32 %v60, %v345
  %v347 = vpop.f32.mrf.mxu0
  %348 = vmatprep.mubr.f32.mxu0 0.0
  %349 = vmatmul.mubr.f32.gmra.mxu0 %v139
  %v350 = vpop.f32.mrf.mxu0
  %v351 = vadd.f32 %v60, %v350
  %v352 = vpop.f32.mrf.mxu0
  %353 = vmatprep.mubr.f32.mxu0 0.0
  %354 = vmatmul.mubr.f32.gmra.mxu0 %v142
  %v355 = vpop.f32.mrf.mxu0
  %v356 = vadd.f32 %v60, %v355
  %v357 = vpop.f32.mrf.mxu0
  %358 = vmatprep.mubr.f32.mxu0 0.0
  %359 = vmatmul.mubr.f32.gmra.mxu0 %v145
  %v360 = vpop.f32.mrf.mxu0
  %v361 = vadd.f32 %v60, %v360
  %v362 = vpop.f32.mrf.mxu0
  %363 = vmatprep.mubr.f32.mxu0 0.0
  %364 = vmatmul.mubr.f32.gmra.mxu0 %v148
  %v365 = vpop.f32.mrf.mxu0
  %v366 = vadd.f32 %v60, %v365
  %v367 = vpop.f32.mrf.mxu0
  %368 = vmatprep.mubr.f32.mxu0 0.0
  %369 = vmatmul.mubr.f32.gmra.mxu0 %v151
  %v370 = vpop.f32.mrf.mxu0
  %v371 = vadd.f32 %v60, %v370
  %v372 = vpop.f32.mrf.mxu0
  %373 = vmatprep.mubr.f32.mxu0 0.0
  %374 = vmatmul.mubr.f32.gmra.mxu0 %v154
  %v375 = vpop.f32.mrf.mxu0
  %v376 = vadd.f32 %v60, %v375
  %v377 = vpop.f32.mrf.mxu0
  %378 = vmatprep.mubr.f32.mxu0 0.0
  %379 = vmatmul.mubr.f32.gmra.mxu0 %v157
  %v380 = vpop.f32.mrf.mxu0
  %v381 = vadd.f32 %v60, %v380
  %v382 = vpop.f32.mrf.mxu0
  %383 = vdwg.mxu0
  %vm384 = vcmask 31744
  %385 = vst.msk [vmem:[%s3] sm:$0xff] %vm384, %v226
  %386 = vst.msk [vmem:[%s3 + $0x8] sm:$0xff] %vm384, %v231
  %387 = vst.msk [vmem:[%s3 + $0x10] sm:$0xff] %vm384, %v236
  %388 = vst.msk [vmem:[%s3 + $0x18] sm:$0xff] %vm384, %v241
  %389 = vst.msk [vmem:[%s3 + $0x20] sm:$0xff] %vm384, %v246
  %390 = vst.msk [vmem:[%s3 + $0x28] sm:$0xff] %vm384, %v251
  %391 = vst.msk [vmem:[%s3 + $0x30] sm:$0xff] %vm384, %v256
  %392 = vst.msk [vmem:[%s3 + $0x38] sm:$0xff] %vm384, %v261
  %393 = vst.msk [vmem:[%s3 + $0x40] sm:$0xff] %vm384, %v266
  %394 = vst.msk [vmem:[%s3 + $0x48] sm:$0xff] %vm384, %v271
  %395 = vst.msk [vmem:[%s3 + $0x50] sm:$0xff] %vm384, %v276
  %396 = vst.msk [vmem:[%s3 + $0x58] sm:$0xff] %vm384, %v281
  %397 = vst.msk [vmem:[%s3 + $0x60] sm:$0xff] %vm384, %v286
  %398 = vst.msk [vmem:[%s3 + $0x68] sm:$0xff] %vm384, %v291
  %399 = vst.msk [vmem:[%s3 + $0x70] sm:$0xff] %vm384, %v296
  %400 = vst.msk [vmem:[%s3 + $0x78] sm:$0xff] %vm384, %v301
  %401 = vst.msk [vmem:[%s3 + $0x80] sm:$0xff] %vm384, %v306
  %402 = vst.msk [vmem:[%s3 + $0x88] sm:$0xff] %vm384, %v311
  %403 = vst.msk [vmem:[%s3 + $0x90] sm:$0xff] %vm384, %v316
  %404 = vst.msk [vmem:[%s3 + $0x98] sm:$0xff] %vm384, %v321
  %405 = vst.msk [vmem:[%s3 + $0xa0] sm:$0xff] %vm384, %v326
  %406 = vst.msk [vmem:[%s3 + $0xa8] sm:$0xff] %vm384, %v331
  %407 = vst.msk [vmem:[%s3 + $0xb0] sm:$0xff] %vm384, %v336
  %408 = vst.msk [vmem:[%s3 + $0xb8] sm:$0xff] %vm384, %v341
  %409 = vst.msk [vmem:[%s3 + $0xc0] sm:$0xff] %vm384, %v346
  %410 = vst.msk [vmem:[%s3 + $0xc8] sm:$0xff] %vm384, %v351
  %411 = vst.msk [vmem:[%s3 + $0xd0] sm:$0xff] %vm384, %v356
  %412 = vst.msk [vmem:[%s3 + $0xd8] sm:$0xff] %vm384, %v361
  %413 = vst.msk [vmem:[%s3 + $0xe0] sm:$0xff] %vm384, %v366
  %414 = vst.msk [vmem:[%s3 + $0xe8] sm:$0xff] %vm384, %v371
  %415 = vst.msk [vmem:[%s3 + $0xf0] sm:$0xff] %vm384, %v376
  %416 = vst.msk [vmem:[%s3 + $0xf8] sm:$0xff] %vm384, %v381
  // Predicated region
  $region14: #{cnn_forward.5} parent=0 // pred_check
    _
  $region15: #{cnn_forward.5} parent=0 // pred_check_branch
    %418 = sbr.rel (0) target = $region17
  $region16: #{cnn_forward.5} parent=0 // pred_region
    _
  $region17: #{cnn_forward.5} parent=0 // pred_fallthru
    _
  // Predicated region
  $region18: #{cnn_forward.5} parent=0 // pred_check
    _
  $region19: #{cnn_forward.5} parent=0 // pred_check_branch
    %420 = sbr.rel (0) target = $region21
  $region20: #{cnn_forward.5} parent=0 // pred_region
    _
  $region21: #{cnn_forward.5} parent=0 // pred_fallthru
    _

</llo_original>
